<compile_context>
chip_gen: v6e
topology: v6e:2x2x1
jax: 0.10.0
libtpu: 0.0.40
codegen_flags: <defaults>
</compile_context>

<pallas_src>
import jax
import jax.numpy as jnp
from jax.experimental import pallas as pl
from jax.experimental.pallas import tpu as pltpu

INPUT_SIZE = 784     # K stays unpadded; Mosaic handles the 784 -> 896 lane remainder
HIDDEN_SIZE = 500
NUM_CLASSES = 10

HID_PAD = 512        # 4 * 128 lanes
OUT_PAD = 128        # lane-dense output slab

_SUBLANE = 8


def _round_up(x, m):
    return (x + m - 1) // m * m


def mlp_kernel(x_ref, w1_ref, b1_ref, w2_ref, b2_ref, o_ref):
    # Layer 1: Linear(784 -> 512 padded) + ReLU.
    # Cast x to bf16 in-kernel so the matmul is a single-pass bf16 MXU op with
    # f32 accumulation; bias is folded into the result init.
    x = x_ref[...].astype(jnp.bfloat16)
    h = b1_ref[...] + jnp.dot(x, w1_ref[...],
                              preferred_element_type=jnp.float32)
    h = jnp.maximum(h, 0.0)
    # Layer 2: Linear(512 -> 128 padded). Cast activations to bf16 so this matmul
    # is also bf16 on the MXU; accumulate in f32.
    out = b2_ref[...] + jnp.dot(h.astype(jnp.bfloat16), w2_ref[...],
                                preferred_element_type=jnp.float32)
    o_ref[...] = out.astype(o_ref.dtype)   # [block_b, 128] lane-dense store


def _resident_spec(block_shape):
    """Constant-index (VMEM-resident) operand; single-buffered when supported."""
    try:
        return pl.BlockSpec(block_shape, lambda i: (0, 0),
                            pipeline_mode=pl.Buffered(1))
    except (TypeError, AttributeError):
        # Older API without pipeline_mode: fall back to default double buffering.
        return pl.BlockSpec(block_shape, lambda i: (0, 0))


def neural_net_forward(x, w1, b1, w2, b2, *, tm=512):
    """relu(x @ W1 + b1) @ W2 + b2.

    x:  [B, 784]  f32  (unpadded, streamed straight into the kernel)
    w1: [784, 512] bf16 (cols >= 500 zero)
    b1: [1, 512]   f32  (cols >= 500 zero)
    w2: [512, 128] bf16 (rows >= 500 and cols >= 10 zero)
    b2: [1, 128]   f32  (cols >= 10 zero)
    Returns [B, 10] f32.
    """
    B = x.shape[0]
    B8 = _round_up(B, _SUBLANE)
    if B8 >= 2 * _SUBLANE:
        # >= 2 grid steps (keeps both v7x TensorCores busy) and a near-exact split
        # so batch-pad waste is at most a few sublane rows per tile.
        n_steps = max(pl.cdiv(B8, tm), 2)
        block_b = _round_up(pl.cdiv(B8, n_steps), _SUBLANE)
    else:
        block_b = B   # tiny batch: one block equal to the full batch dim
    grid = (pl.cdiv(B, block_b),)

    out_p = pl.pallas_call(
        mlp_kernel,
        out_shape=jax.ShapeDtypeStruct((B, OUT_PAD), jnp.float32),
        grid=grid,
        in_specs=[
            pl.BlockSpec((block_b, INPUT_SIZE), lambda i: (i, 0)),
            _resident_spec((INPUT_SIZE, HID_PAD)),
            _resident_spec((1, HID_PAD)),
            _resident_spec((HID_PAD, OUT_PAD)),
            _resident_spec((1, OUT_PAD)),
        ],
        out_specs=pl.BlockSpec((block_b, OUT_PAD), lambda i: (i, 0)),
        compiler_params=pltpu.CompilerParams(
            dimension_semantics=("parallel",)),
    )(x, w1, b1, w2, b2)
    return out_p[:, :NUM_CLASSES]


def init_params(key):
    """nn.Linear default init (uniform +-1/sqrt(fan_in)); zero-padded, bf16 weights."""
    k1, k2, k3, k4 = jax.random.split(key, 4)
    bound1 = 1.0 / jnp.sqrt(INPUT_SIZE)
    bound2 = 1.0 / jnp.sqrt(HIDDEN_SIZE)
    w1 = jax.random.uniform(k1, (INPUT_SIZE, HIDDEN_SIZE), jnp.float32,
                            -bound1, bound1)
    b1 = jax.random.uniform(k2, (HIDDEN_SIZE,), jnp.float32, -bound1, bound1)
    w2 = jax.random.uniform(k3, (HIDDEN_SIZE, NUM_CLASSES), jnp.float32,
                            -bound2, bound2)
    b2 = jax.random.uniform(k4, (NUM_CLASSES,), jnp.float32, -bound2, bound2)

    # Pad hidden to 512 lanes and classes to a 128-lane slab; K (=784) stays unpadded.
    w1_p = jnp.zeros((INPUT_SIZE, HID_PAD), jnp.float32).at[:, :HIDDEN_SIZE].set(w1)
    b1_p = jnp.zeros((1, HID_PAD), jnp.float32).at[0, :HIDDEN_SIZE].set(b1)
    w2_p = jnp.zeros((HID_PAD, OUT_PAD), jnp.float32).at[:HIDDEN_SIZE, :NUM_CLASSES].set(w2)
    b2_p = jnp.zeros((1, OUT_PAD), jnp.float32).at[0, :NUM_CLASSES].set(b2)
    return (w1_p.astype(jnp.bfloat16), b1_p,
            w2_p.astype(jnp.bfloat16), b2_p)


def _reference(x, w1, b1, w2, b2):
    """Plain-JAX forward mirroring the kernel's bf16 rounding of operands."""
    xb = x.astype(jnp.bfloat16).astype(jnp.float32)
    w1f = w1[:, :HIDDEN_SIZE].astype(jnp.float32)
    w2f = w2[:HIDDEN_SIZE, :NUM_CLASSES].astype(jnp.float32)
    h = jnp.maximum(xb @ w1f + b1[0, :HIDDEN_SIZE], 0.0)
    h = h.astype(jnp.bfloat16).astype(jnp.float32)
    return h @ w2f + b2[0, :NUM_CLASSES]


if __name__ == "__main__":
    key = jax.random.PRNGKey(0)
    kx, kp = jax.random.split(key)
    w1, b1, w2, b2 = init_params(kp)

    # Small batch: single grid step, block equal to the whole 8-row batch.
    batch = 8
    x = jax.random.normal(kx, (batch, INPUT_SIZE), jnp.float32)
    out = jax.block_until_ready(neural_net_forward(x, w1, b1, w2, b2))
    ref = _reference(x, w1, b1, w2, b2)
    assert out.shape == (batch, NUM_CLASSES)
    assert jnp.allclose(out, ref, atol=2e-2, rtol=2e-2)

    # Non-multiple batch exercises the 2-step grid with a partial last block
    # (304 processed rows now vs. 512 previously).
    batch2 = 300
    x2 = jax.random.normal(jax.random.PRNGKey(1), (batch2, INPUT_SIZE), jnp.float32)
    out2 = jax.block_until_ready(neural_net_forward(x2, w1, b1, w2, b2))
    ref2 = _reference(x2, w1, b1, w2, b2)
    assert out2.shape == (batch2, NUM_CLASSES)
    assert jnp.allclose(out2, ref2, atol=2e-2, rtol=2e-2)

    print("KERNEL_OK")
</pallas_src>

<mosaic_0001>
module attributes {stable_mosaic.version = 11 : i64} {
  func.func @mlp_kernel(%arg0: i32, %arg1: memref<8x784xf32, #tpu.memory_space<vmem>>, %arg2: memref<784x512xbf16, #tpu.memory_space<vmem>>, %arg3: memref<1x512xf32, #tpu.memory_space<vmem>>, %arg4: memref<512x128xbf16, #tpu.memory_space<vmem>>, %arg5: memref<1x128xf32, #tpu.memory_space<vmem>>, %arg6: memref<8x128xf32, #tpu.memory_space<vmem>>) attributes {dimension_semantics = [#tpu.dimension_semantics<parallel>], iteration_bounds = array<i64: 1>, scalar_prefetch = 0 : i64, scratch_operands = 0 : i64, tpu.core_type = #tpu.core_type<tc>, window_params = [{transform_indices = @transform_0, window_bounds = array<i64: 8, 784>}, {pipeline_mode = #tpu.pipeline_mode<synchronous>, transform_indices = @transform_1, window_bounds = array<i64: 784, 512>}, {pipeline_mode = #tpu.pipeline_mode<synchronous>, transform_indices = @transform_2, window_bounds = array<i64: 1, 512>}, {pipeline_mode = #tpu.pipeline_mode<synchronous>, transform_indices = @transform_3, window_bounds = array<i64: 512, 128>}, {pipeline_mode = #tpu.pipeline_mode<synchronous>, transform_indices = @transform_4, window_bounds = array<i64: 1, 128>}, {transform_indices = @transform_5, window_bounds = array<i64: 8, 128>}]} {
    %c0 = arith.constant 0 : index
    %c0_0 = arith.constant 0 : index
    %0 = vector.load %arg1[%c0, %c0_0] : memref<8x784xf32, #tpu.memory_space<vmem>>, vector<8x784xf32>
    %1 = arith.truncf %0 : vector<8x784xf32> to vector<8x784xbf16>
    %c0_1 = arith.constant 0 : index
    %c0_2 = arith.constant 0 : index
    %2 = vector.load %arg3[%c0_1, %c0_2] : memref<1x512xf32, #tpu.memory_space<vmem>>, vector<1x512xf32>
    %c0_3 = arith.constant 0 : index
    %c0_4 = arith.constant 0 : index
    %3 = vector.load %arg2[%c0_3, %c0_4] : memref<784x512xbf16, #tpu.memory_space<vmem>>, vector<784x512xbf16>
    %cst = arith.constant dense<0.000000e+00> : vector<8x512xf32>
    %4 = tpu.matmul %1, %3, %cst {dimension_numbers = #tpu.dot_dimension_numbers<[1], [0], [0], [1], [0, 0, 1, 1], [], []>} : vector<8x784xbf16>, vector<784x512xbf16>, vector<8x512xf32> -> vector<8x512xf32>
    %5 = vector.broadcast %2 : vector<1x512xf32> to vector<8x512xf32>
    %6 = arith.addf %5, %4 : vector<8x512xf32>
    %cst_5 = arith.constant 0.000000e+00 : f32
    %7 = vector.broadcast %cst_5 : f32 to vector<8x512xf32>
    %8 = arith.maximumf %6, %7 : vector<8x512xf32>
    %c0_6 = arith.constant 0 : index
    %c0_7 = arith.constant 0 : index
    %9 = vector.load %arg5[%c0_6, %c0_7] : memref<1x128xf32, #tpu.memory_space<vmem>>, vector<1x128xf32>
    %10 = arith.truncf %8 : vector<8x512xf32> to vector<8x512xbf16>
    %c0_8 = arith.constant 0 : index
    %c0_9 = arith.constant 0 : index
    %11 = vector.load %arg4[%c0_8, %c0_9] : memref<512x128xbf16, #tpu.memory_space<vmem>>, vector<512x128xbf16>
    %cst_10 = arith.constant dense<0.000000e+00> : vector<8x128xf32>
    %12 = tpu.matmul %10, %11, %cst_10 {dimension_numbers = #tpu.dot_dimension_numbers<[1], [0], [0], [1], [0, 0, 1, 1], [], []>} : vector<8x512xbf16>, vector<512x128xbf16>, vector<8x128xf32> -> vector<8x128xf32>
    %13 = vector.broadcast %9 : vector<1x128xf32> to vector<8x128xf32>
    %14 = arith.addf %13, %12 : vector<8x128xf32>
    %c0_11 = arith.constant 0 : index
    %c0_12 = arith.constant 0 : index
    %15 = vector.load %arg6[%c0_11, %c0_12] : memref<8x128xf32, #tpu.memory_space<vmem>>, vector<8x128xf32>
    tpu.vector_store %arg6[%c0_11, %c0_12], %14 {strides = array<i32>} : memref<8x128xf32, #tpu.memory_space<vmem>>, vector<8x128xf32>,
    return
  }
  func.func @transform_0(%arg0: i32) -> (i32, i32) {
    %c0_i32 = arith.constant 0 : i32
    %c0_i32_0 = arith.constant 0 : i32
    return %arg0, %c0_i32 : i32, i32
  }
  func.func @transform_1(%arg0: i32) -> (i32, i32) {
    %c0_i32 = arith.constant 0 : i32
    %c0_i32_0 = arith.constant 0 : i32
    %c0_i32_1 = arith.constant 0 : i32
    return %c0_i32, %c0_i32_0 : i32, i32
  }
  func.func @transform_2(%arg0: i32) -> (i32, i32) {
    %c0_i32 = arith.constant 0 : i32
    %c0_i32_0 = arith.constant 0 : i32
    %c0_i32_1 = arith.constant 0 : i32
    return %c0_i32, %c0_i32_0 : i32, i32
  }
  func.func @transform_3(%arg0: i32) -> (i32, i32) {
    %c0_i32 = arith.constant 0 : i32
    %c0_i32_0 = arith.constant 0 : i32
    %c0_i32_1 = arith.constant 0 : i32
    return %c0_i32, %c0_i32_0 : i32, i32
  }
  func.func @transform_4(%arg0: i32) -> (i32, i32) {
    %c0_i32 = arith.constant 0 : i32
    %c0_i32_0 = arith.constant 0 : i32
    %c0_i32_1 = arith.constant 0 : i32
    return %c0_i32, %c0_i32_0 : i32, i32
  }
  func.func @transform_5(%arg0: i32) -> (i32, i32) {
    %c0_i32 = arith.constant 0 : i32
    %c0_i32_0 = arith.constant 0 : i32
    return %arg0, %c0_i32 : i32, i32
  }
}

</mosaic_0001>

<llo_original>
// kernel: tpu_custom_call.1
$region0: #{tpu_custom_call.1}
  #allocation0 [shape = 'u32[]', space=smem, size = 0x4, offset = 0x4, fixed_abs, tag = 'smem constant byte address 0x4 - core index']
  #allocation1 [shape = 'u32[144,128]{1,0:T(1,128)}', space=vmem, size = 0x12000, scoped, tag = 'internal scratch']
  %s0 = inlined_call_operand.hbm [shape: f32[8,784], index: 0, kind: input, shape index: {}]
  %s1 = inlined_call_operand.hbm [shape: bf16[784,512], index: 1, kind: input, shape index: {}]
  %s2 = inlined_call_operand.hbm [shape: f32[1,512], index: 2, kind: input, shape index: {}]
  %s3 = inlined_call_operand.hbm [shape: bf16[512,128], index: 3, kind: input, shape index: {}]
  %s4 = inlined_call_operand.vmem [shape: f32[1,128], index: 4, kind: input, shape index: {}]
  %s5 = inlined_call_operand.hbm [shape: f32[8,128], index: 5, kind: output, shape index: {}]
  %s6 = sld [smem:[#allocation0]]
  $region46: #{tpu_custom_call.1} parent=0
    _
  %s8 = ssub.s32 1, %s6
  %s9 = scalar_select 0, %s8, %s6
  $region1: #{tpu_custom_call.1} parent=0
    #allocation2 [shape = 'u8[28672]{0}', space=vmem, size = 0x7000, scoped, tag = 'input window, operand 0, single buffered']
    #allocation3 [shape = 's32[1]{0}', space=sflag, size = 0x4, scoped, tag = 'scoped memory for tpu_custom_call.1']
    #allocation4 [shape = 's32[1]{0}', space=sflag, size = 0x4, scoped, tag = 'scoped memory for tpu_custom_call.1']
    #allocation5 [shape = 'u8[802816]{0}', space=vmem, size = 0xc4000, scoped, tag = 'input window, operand 1, single buffered']
    #allocation6 [shape = 's32[1]{0}', space=sflag, size = 0x4, scoped, tag = 'scoped memory for tpu_custom_call.1']
    #allocation7 [shape = 'u8[2048]{0}', space=vmem, size = 0x800, scoped, tag = 'input window, operand 2, single buffered']
    #allocation8 [shape = 'u8[131072]{0}', space=vmem, size = 0x20000, scoped, tag = 'input window, operand 3, single buffered']
    #allocation9 [shape = 's32[1]{0}', space=sflag, size = 0x4, scoped, tag = 'scoped memory for tpu_custom_call.1']
    #allocation10 [shape = 'u8[4096]{0}', space=vmem, size = 0x1000, scoped, tag = 'output window, operand 0, single buffered']
    %10 = vsyncpa [#allocation3], 0
    %11 = vsyncpa [#allocation6], 0
    %12 = vsyncpa [#allocation9], 0
    %13 = vsyncpa [#allocation4], 0
    // Predicated region
    $region2: #{tpu_custom_call.1} parent=1 // pred_check
      _
    $region3: #{tpu_custom_call.1} parent=1 // pred_check_branch
      %15 = sbr.rel (0) target = $region5
    $region4: #{tpu_custom_call.1} parent=1 // pred_region
      %s17 = ssub.s32 896, 896
      %18 = vsyncadd [#allocation3], %s17
      %s20 = sshll.u32 [#allocation2], 4
      %s21 = int_to_ptr.vmem [resolvable:$true] %s20
      %23 = dma.hbm_to_vmem [thread:$0]  %s0, 896, %s21, [#allocation3]
    $region5: #{tpu_custom_call.1} parent=1 // pred_fallthru
      _
    // Predicated region
    $region6: #{tpu_custom_call.1} parent=1 // pred_check
      _
    $region7: #{tpu_custom_call.1} parent=1 // pred_check_branch
      %25 = sbr.rel (0) target = $region9
    $region8: #{tpu_custom_call.1} parent=1 // pred_region
      %s27 = ssub.s32 25088, 25088
      %28 = vsyncadd [#allocation6], %s27
      %s29 = sshll.u32 [#allocation5], 4
      %s30 = int_to_ptr.vmem [resolvable:$true] %s29
      %35 = dma.hbm_to_vmem [thread:$0]  %s1, 25088, %s30, [#allocation6], 256, 256, 16
    $region9: #{tpu_custom_call.1} parent=1 // pred_fallthru
      _
    // Predicated region
    $region10: #{tpu_custom_call.1} parent=1 // pred_check
      _
    $region11: #{tpu_custom_call.1} parent=1 // pred_check_branch
      %37 = sbr.rel (0) target = $region13
    $region12: #{tpu_custom_call.1} parent=1 // pred_region
      %s39 = ssub.s32 64, 64
      %40 = vsyncadd [#allocation6], %s39
      %s42 = sshll.u32 [#allocation7], 4
      %s43 = int_to_ptr.vmem [resolvable:$true] %s42
      %45 = dma.hbm_to_vmem [thread:$0]  %s2, 64, %s43, [#allocation6]
    $region13: #{tpu_custom_call.1} parent=1 // pred_fallthru
      _
    // Predicated region
    $region14: #{tpu_custom_call.1} parent=1 // pred_check
      _
    $region15: #{tpu_custom_call.1} parent=1 // pred_check_branch
      %47 = sbr.rel (0) target = $region17
    $region16: #{tpu_custom_call.1} parent=1 // pred_region
      %s49 = ssub.s32 4096, 4096
      %50 = vsyncadd [#allocation9], %s49
      %s51 = sshll.u32 [#allocation8], 4
      %s52 = int_to_ptr.vmem [resolvable:$true] %s51
      %57 = dma.hbm_to_vmem [thread:$0]  %s3, 4096, %s52, [#allocation9], 64, 64, 4
    $region17: #{tpu_custom_call.1} parent=1 // pred_fallthru
      _
    // Predicated region
    $region18: #{tpu_custom_call.1} parent=1 // pred_check
      _
    $region19: #{tpu_custom_call.1} parent=1 // pred_check_branch
      %59 = sbr.rel (0) target = $region21
    $region20: #{tpu_custom_call.1} parent=1 // pred_region
      _
    $region21: #{tpu_custom_call.1} parent=1 // pred_fallthru
      _
    // Predicated region
    $region22: #{tpu_custom_call.1} parent=1 // pred_check
      _
    $region23: #{tpu_custom_call.1} parent=1 // pred_check_branch
      %61 = sbr.rel (0) target = $region25
    $region24: #{tpu_custom_call.1} parent=1 // pred_region
      %62 = dma.done [#allocation3], 896
    $region25: #{tpu_custom_call.1} parent=1 // pred_fallthru
      _
    // Predicated region
    $region26: #{tpu_custom_call.1} parent=1 // pred_check
      _
    $region27: #{tpu_custom_call.1} parent=1 // pred_check_branch
      %64 = sbr.rel (0) target = $region29
    $region28: #{tpu_custom_call.1} parent=1 // pred_region
      %65 = dma.done [#allocation6], 25088
    $region29: #{tpu_custom_call.1} parent=1 // pred_fallthru
      _
    // Predicated region
    $region30: #{tpu_custom_call.1} parent=1 // pred_check
      _
    $region31: #{tpu_custom_call.1} parent=1 // pred_check_branch
      %67 = sbr.rel (0) target = $region33
    $region32: #{tpu_custom_call.1} parent=1 // pred_region
      %68 = dma.done [#allocation6], 64
    $region33: #{tpu_custom_call.1} parent=1 // pred_fallthru
      _
    // Predicated region
    $region34: #{tpu_custom_call.1} parent=1 // pred_check
      _
    $region35: #{tpu_custom_call.1} parent=1 // pred_check_branch
      %70 = sbr.rel (0) target = $region37
    $region36: #{tpu_custom_call.1} parent=1 // pred_region
      %71 = dma.done [#allocation9], 4096
    $region37: #{tpu_custom_call.1} parent=1 // pred_fallthru
      _
    %v73 = vld [vmem:[#allocation2] sm:$0xff]
    %v74 = vld [vmem:[#allocation2 + $0x8] sm:$0xff]
    %v75 = vld [vmem:[#allocation2 + $0x10] sm:$0xff]
    %v76 = vld [vmem:[#allocation2 + $0x18] sm:$0xff]
    %v77 = vld [vmem:[#allocation2 + $0x20] sm:$0xff]
    %v78 = vld [vmem:[#allocation2 + $0x28] sm:$0xff]
    %v79 = vld [vmem:[#allocation2 + $0x30] sm:$0xff]
    %v80 = vpack.c.bf16 %v73, %v73
    %v81 = vpack.c.bf16 %v74, %v74
    %v82 = vpack.c.bf16 %v75, %v75
    %v83 = vpack.c.bf16 %v76, %v76
    %v84 = vpack.c.bf16 %v77, %v77
    %v85 = vpack.c.bf16 %v78, %v78
    %v86 = vpack.c.bf16 %v79, %v79
    %v87 = vld [vmem:[#allocation7] sm:$0xf]
    %v88 = vld [vmem:[#allocation5] sm:$0xff]
    %v89 = vld [vmem:[#allocation5 + $0x8] sm:$0xff]
    %v90 = vld [vmem:[#allocation5 + $0x10] sm:$0xff]
    %v91 = vld [vmem:[#allocation5 + $0x18] sm:$0xff]
    %v92 = vld [vmem:[#allocation5 + $0x20] sm:$0xff]
    %v93 = vld [vmem:[#allocation5 + $0x28] sm:$0xff]
    %v94 = vld [vmem:[#allocation5 + $0x30] sm:$0xff]
    %v95 = vld [vmem:[#allocation5 + $0x38] sm:$0xff]
    %v96 = vld [vmem:[#allocation5 + $0x40] sm:$0xff]
    %v97 = vld [vmem:[#allocation5 + $0x48] sm:$0xff]
    %v98 = vld [vmem:[#allocation5 + $0x50] sm:$0xff]
    %v99 = vld [vmem:[#allocation5 + $0x58] sm:$0xff]
    %v100 = vld [vmem:[#allocation5 + $0x60] sm:$0xff]
    %v101 = vld [vmem:[#allocation5 + $0x68] sm:$0xff]
    %v102 = vld [vmem:[#allocation5 + $0x70] sm:$0xff]
    %v103 = vld [vmem:[#allocation5 + $0x78] sm:$0xff]
    %v104 = vld [vmem:[#allocation5 + $0x80] sm:$0xff]
    %v105 = vld [vmem:[#allocation5 + $0x88] sm:$0xff]
    %v106 = vld [vmem:[#allocation5 + $0x90] sm:$0xff]
    %v107 = vld [vmem:[#allocation5 + $0x98] sm:$0xff]
    %v108 = vld [vmem:[#allocation5 + $0xa0] sm:$0xff]
    %v109 = vld [vmem:[#allocation5 + $0xa8] sm:$0xff]
    %v110 = vld [vmem:[#allocation5 + $0xb0] sm:$0xff]
    %v111 = vld [vmem:[#allocation5 + $0xb8] sm:$0xff]
    %v112 = vld [vmem:[#allocation5 + $0xc0] sm:$0xff]
    %v113 = vld [vmem:[#allocation5 + $0xc8] sm:$0xff]
    %v114 = vld [vmem:[#allocation5 + $0xd0] sm:$0xff]
    %v115 = vld [vmem:[#allocation5 + $0xd8] sm:$0xff]
    %v116 = vld [vmem:[#allocation5 + $0xe0] sm:$0xff]
    %v117 = vld [vmem:[#allocation5 + $0xe8] sm:$0xff]
    %v118 = vld [vmem:[#allocation5 + $0xf0] sm:$0xff]
    %v119 = vld [vmem:[#allocation5 + $0xf8] sm:$0xff]
    %v120 = vld [vmem:[#allocation5 + $0x100] sm:$0xff]
    %v121 = vld [vmem:[#allocation5 + $0x108] sm:$0xff]
    %v122 = vld [vmem:[#allocation5 + $0x110] sm:$0xff]
    %v123 = vld [vmem:[#allocation5 + $0x118] sm:$0xff]
    %v124 = vld [vmem:[#allocation5 + $0x120] sm:$0xff]
    %v125 = vld [vmem:[#allocation5 + $0x128] sm:$0xff]
    %v126 = vld [vmem:[#allocation5 + $0x130] sm:$0xff]
    %v127 = vld [vmem:[#allocation5 + $0x138] sm:$0xff]
    %v128 = vld [vmem:[#allocation5 + $0x140] sm:$0xff]
    %v129 = vld [vmem:[#allocation5 + $0x148] sm:$0xff]
    %v130 = vld [vmem:[#allocation5 + $0x150] sm:$0xff]
    %v131 = vld [vmem:[#allocation5 + $0x158] sm:$0xff]
    %v132 = vld [vmem:[#allocation5 + $0x160] sm:$0xff]
    %v133 = vld [vmem:[#allocation5 + $0x168] sm:$0xff]
    %v134 = vld [vmem:[#allocation5 + $0x170] sm:$0xff]
    %v135 = vld [vmem:[#allocation5 + $0x178] sm:$0xff]
    %v136 = vld [vmem:[#allocation5 + $0x180] sm:$0xff]
    %v137 = vld [vmem:[#allocation5 + $0x188] sm:$0xff]
    %v138 = vld [vmem:[#allocation5 + $0x190] sm:$0xff]
    %v139 = vld [vmem:[#allocation5 + $0x198] sm:$0xff]
    %v140 = vld [vmem:[#allocation5 + $0x1a0] sm:$0xff]
    %v141 = vld [vmem:[#allocation5 + $0x1a8] sm:$0xff]
    %v142 = vld [vmem:[#allocation5 + $0x1b0] sm:$0xff]
    %v143 = vld [vmem:[#allocation5 + $0x1b8] sm:$0xff]
    %v144 = vld [vmem:[#allocation5 + $0x1c0] sm:$0xff]
    %v145 = vld [vmem:[#allocation5 + $0x1c8] sm:$0xff]
    %v146 = vld [vmem:[#allocation5 + $0x1d0] sm:$0xff]
    %v147 = vld [vmem:[#allocation5 + $0x1d8] sm:$0xff]
    %v148 = vld [vmem:[#allocation5 + $0x1e0] sm:$0xff]
    %v149 = vld [vmem:[#allocation5 + $0x1e8] sm:$0xff]
    %v150 = vld [vmem:[#allocation5 + $0x1f0] sm:$0xff]
    %v151 = vld [vmem:[#allocation5 + $0x1f8] sm:$0xff]
    %v152 = vld [vmem:[#allocation5 + $0x200] sm:$0xff]
    %v153 = vld [vmem:[#allocation5 + $0x208] sm:$0xff]
    %v154 = vld [vmem:[#allocation5 + $0x210] sm:$0xff]
    %v155 = vld [vmem:[#allocation5 + $0x218] sm:$0xff]
    %v156 = vld [vmem:[#allocation5 + $0x220] sm:$0xff]
    %v157 = vld [vmem:[#allocation5 + $0x228] sm:$0xff]
    %v158 = vld [vmem:[#allocation5 + $0x230] sm:$0xff]
    %v159 = vld [vmem:[#allocation5 + $0x238] sm:$0xff]
    %v160 = vld [vmem:[#allocation5 + $0x240] sm:$0xff]
    %v161 = vld [vmem:[#allocation5 + $0x248] sm:$0xff]
    %v162 = vld [vmem:[#allocation5 + $0x250] sm:$0xff]
    %v163 = vld [vmem:[#allocation5 + $0x258] sm:$0xff]
    %v164 = vld [vmem:[#allocation5 + $0x260] sm:$0xff]
    %v165 = vld [vmem:[#allocation5 + $0x268] sm:$0xff]
    %v166 = vld [vmem:[#allocation5 + $0x270] sm:$0xff]
    %v167 = vld [vmem:[#allocation5 + $0x278] sm:$0xff]
    %v168 = vld [vmem:[#allocation5 + $0x280] sm:$0xff]
    %v169 = vld [vmem:[#allocation5 + $0x288] sm:$0xff]
    %v170 = vld [vmem:[#allocation5 + $0x290] sm:$0xff]
    %v171 = vld [vmem:[#allocation5 + $0x298] sm:$0xff]
    %v172 = vld [vmem:[#allocation5 + $0x2a0] sm:$0xff]
    %v173 = vld [vmem:[#allocation5 + $0x2a8] sm:$0xff]
    %v174 = vld [vmem:[#allocation5 + $0x2b0] sm:$0xff]
    %v175 = vld [vmem:[#allocation5 + $0x2b8] sm:$0xff]
    %v176 = vld [vmem:[#allocation5 + $0x2c0] sm:$0xff]
    %v177 = vld [vmem:[#allocation5 + $0x2c8] sm:$0xff]
    %v178 = vld [vmem:[#allocation5 + $0x2d0] sm:$0xff]
    %v179 = vld [vmem:[#allocation5 + $0x2d8] sm:$0xff]
    %v180 = vld [vmem:[#allocation5 + $0x2e0] sm:$0xff]
    %v181 = vld [vmem:[#allocation5 + $0x2e8] sm:$0xff]
    %v182 = vld [vmem:[#allocation5 + $0x2f0] sm:$0xff]
    %v183 = vld [vmem:[#allocation5 + $0x2f8] sm:$0xff]
    %v184 = vld [vmem:[#allocation5 + $0x300] sm:$0xff]
    %v185 = vld [vmem:[#allocation5 + $0x308] sm:$0xff]
    %v186 = vld [vmem:[#allocation5 + $0x310] sm:$0xff]
    %v187 = vld [vmem:[#allocation5 + $0x318] sm:$0xff]
    %v188 = vld [vmem:[#allocation5 + $0x320] sm:$0xff]
    %v189 = vld [vmem:[#allocation5 + $0x328] sm:$0xff]
    %v190 = vld [vmem:[#allocation5 + $0x330] sm:$0xff]
    %v191 = vld [vmem:[#allocation5 + $0x338] sm:$0xff]
    %v192 = vld [vmem:[#allocation5 + $0x340] sm:$0xff]
    %v193 = vld [vmem:[#allocation5 + $0x348] sm:$0xff]
    %v194 = vld [vmem:[#allocation5 + $0x350] sm:$0xff]
    %v195 = vld [vmem:[#allocation5 + $0x358] sm:$0xff]
    %v196 = vld [vmem:[#allocation5 + $0x360] sm:$0xff]
    %v197 = vld [vmem:[#allocation5 + $0x368] sm:$0xff]
    %v198 = vld [vmem:[#allocation5 + $0x370] sm:$0xff]
    %v199 = vld [vmem:[#allocation5 + $0x378] sm:$0xff]
    %v200 = vld [vmem:[#allocation5 + $0x380] sm:$0xff]
    %v201 = vld [vmem:[#allocation5 + $0x388] sm:$0xff]
    %v202 = vld [vmem:[#allocation5 + $0x390] sm:$0xff]
    %v203 = vld [vmem:[#allocation5 + $0x398] sm:$0xff]
    %v204 = vld [vmem:[#allocation5 + $0x3a0] sm:$0xff]
    %v205 = vld [vmem:[#allocation5 + $0x3a8] sm:$0xff]
    %v206 = vld [vmem:[#allocation5 + $0x3b0] sm:$0xff]
    %v207 = vld [vmem:[#allocation5 + $0x3b8] sm:$0xff]
    %v208 = vld [vmem:[#allocation5 + $0x3c0] sm:$0xff]
    %v209 = vld [vmem:[#allocation5 + $0x3c8] sm:$0xff]
    %v210 = vld [vmem:[#allocation5 + $0x3d0] sm:$0xff]
    %v211 = vld [vmem:[#allocation5 + $0x3d8] sm:$0xff]
    %v212 = vld [vmem:[#allocation5 + $0x3e0] sm:$0xff]
    %v213 = vld [vmem:[#allocation5 + $0x3e8] sm:$0xff]
    %v214 = vld [vmem:[#allocation5 + $0x3f0] sm:$0xff]
    %v215 = vld [vmem:[#allocation5 + $0x3f8] sm:$0xff]
    %v216 = vld [vmem:[#allocation5 + $0x400] sm:$0xff]
    %v217 = vld [vmem:[#allocation5 + $0x408] sm:$0xff]
    %v218 = vld [vmem:[#allocation5 + $0x410] sm:$0xff]
    %v219 = vld [vmem:[#allocation5 + $0x418] sm:$0xff]
    %v220 = vld [vmem:[#allocation5 + $0x420] sm:$0xff]
    %v221 = vld [vmem:[#allocation5 + $0x428] sm:$0xff]
    %v222 = vld [vmem:[#allocation5 + $0x430] sm:$0xff]
    %v223 = vld [vmem:[#allocation5 + $0x438] sm:$0xff]
    %v224 = vld [vmem:[#allocation5 + $0x440] sm:$0xff]
    %v225 = vld [vmem:[#allocation5 + $0x448] sm:$0xff]
    %v226 = vld [vmem:[#allocation5 + $0x450] sm:$0xff]
    %v227 = vld [vmem:[#allocation5 + $0x458] sm:$0xff]
    %v228 = vld [vmem:[#allocation5 + $0x460] sm:$0xff]
    %v229 = vld [vmem:[#allocation5 + $0x468] sm:$0xff]
    %v230 = vld [vmem:[#allocation5 + $0x470] sm:$0xff]
    %v231 = vld [vmem:[#allocation5 + $0x478] sm:$0xff]
    %v232 = vld [vmem:[#allocation5 + $0x480] sm:$0xff]
    %v233 = vld [vmem:[#allocation5 + $0x488] sm:$0xff]
    %v234 = vld [vmem:[#allocation5 + $0x490] sm:$0xff]
    %v235 = vld [vmem:[#allocation5 + $0x498] sm:$0xff]
    %v236 = vld [vmem:[#allocation5 + $0x4a0] sm:$0xff]
    %v237 = vld [vmem:[#allocation5 + $0x4a8] sm:$0xff]
    %v238 = vld [vmem:[#allocation5 + $0x4b0] sm:$0xff]
    %v239 = vld [vmem:[#allocation5 + $0x4b8] sm:$0xff]
    %v240 = vld [vmem:[#allocation5 + $0x4c0] sm:$0xff]
    %v241 = vld [vmem:[#allocation5 + $0x4c8] sm:$0xff]
    %v242 = vld [vmem:[#allocation5 + $0x4d0] sm:$0xff]
    %v243 = vld [vmem:[#allocation5 + $0x4d8] sm:$0xff]
    %v244 = vld [vmem:[#allocation5 + $0x4e0] sm:$0xff]
    %v245 = vld [vmem:[#allocation5 + $0x4e8] sm:$0xff]
    %v246 = vld [vmem:[#allocation5 + $0x4f0] sm:$0xff]
    %v247 = vld [vmem:[#allocation5 + $0x4f8] sm:$0xff]
    %v248 = vld [vmem:[#allocation5 + $0x500] sm:$0xff]
    %v249 = vld [vmem:[#allocation5 + $0x508] sm:$0xff]
    %v250 = vld [vmem:[#allocation5 + $0x510] sm:$0xff]
    %v251 = vld [vmem:[#allocation5 + $0x518] sm:$0xff]
    %v252 = vld [vmem:[#allocation5 + $0x520] sm:$0xff]
    %v253 = vld [vmem:[#allocation5 + $0x528] sm:$0xff]
    %v254 = vld [vmem:[#allocation5 + $0x530] sm:$0xff]
    %v255 = vld [vmem:[#allocation5 + $0x538] sm:$0xff]
    %v256 = vld [vmem:[#allocation5 + $0x540] sm:$0xff]
    %v257 = vld [vmem:[#allocation5 + $0x548] sm:$0xff]
    %v258 = vld [vmem:[#allocation5 + $0x550] sm:$0xff]
    %v259 = vld [vmem:[#allocation5 + $0x558] sm:$0xff]
    %v260 = vld [vmem:[#allocation5 + $0x560] sm:$0xff]
    %v261 = vld [vmem:[#allocation5 + $0x568] sm:$0xff]
    %v262 = vld [vmem:[#allocation5 + $0x570] sm:$0xff]
    %v263 = vld [vmem:[#allocation5 + $0x578] sm:$0xff]
    %v264 = vld [vmem:[#allocation5 + $0x580] sm:$0xff]
    %v265 = vld [vmem:[#allocation5 + $0x588] sm:$0xff]
    %v266 = vld [vmem:[#allocation5 + $0x590] sm:$0xff]
    %v267 = vld [vmem:[#allocation5 + $0x598] sm:$0xff]
    %v268 = vld [vmem:[#allocation5 + $0x5a0] sm:$0xff]
    %v269 = vld [vmem:[#allocation5 + $0x5a8] sm:$0xff]
    %v270 = vld [vmem:[#allocation5 + $0x5b0] sm:$0xff]
    %v271 = vld [vmem:[#allocation5 + $0x5b8] sm:$0xff]
    %v272 = vld [vmem:[#allocation5 + $0x5c0] sm:$0xff]
    %v273 = vld [vmem:[#allocation5 + $0x5c8] sm:$0xff]
    %v274 = vld [vmem:[#allocation5 + $0x5d0] sm:$0xff]
    %v275 = vld [vmem:[#allocation5 + $0x5d8] sm:$0xff]
    %v276 = vld [vmem:[#allocation5 + $0x5e0] sm:$0xff]
    %v277 = vld [vmem:[#allocation5 + $0x5e8] sm:$0xff]
    %v278 = vld [vmem:[#allocation5 + $0x5f0] sm:$0xff]
    %v279 = vld [vmem:[#allocation5 + $0x5f8] sm:$0xff]
    %v280 = vld [vmem:[#allocation5 + $0x600] sm:$0xff]
    %v281 = vld [vmem:[#allocation5 + $0x608] sm:$0xff]
    %v282 = vld [vmem:[#allocation5 + $0x610] sm:$0xff]
    %v283 = vld [vmem:[#allocation5 + $0x618] sm:$0xff]
    %v480 = vunpack.c.l.b16 %v88
    %v481 = vunpack.c.h.b16 %v88
    %v482 = vunpack.c.l.b16 %v89
    %v483 = vunpack.c.h.b16 %v89
    %v484 = vunpack.c.l.b16 %v90
    %v485 = vunpack.c.h.b16 %v90
    %v486 = vunpack.c.l.b16 %v91
    %v487 = vunpack.c.h.b16 %v91
    %v488 = vunpack.c.l.b16 %v92
    %v489 = vunpack.c.h.b16 %v92
    %v490 = vunpack.c.l.b16 %v93
    %v491 = vunpack.c.h.b16 %v93
    %v492 = vunpack.c.l.b16 %v94
    %v493 = vunpack.c.h.b16 %v94
    %v494 = vunpack.c.l.b16 %v95
    %v495 = vunpack.c.h.b16 %v95
    %v496 = vunpack.c.l.b16 %v96
    %v497 = vunpack.c.h.b16 %v96
    %v498 = vunpack.c.l.b16 %v97
    %v499 = vunpack.c.h.b16 %v97
    %v500 = vunpack.c.l.b16 %v98
    %v501 = vunpack.c.h.b16 %v98
    %v502 = vunpack.c.l.b16 %v99
    %v503 = vunpack.c.h.b16 %v99
    %v504 = vunpack.c.l.b16 %v100
    %v505 = vunpack.c.h.b16 %v100
    %v506 = vunpack.c.l.b16 %v101
    %v507 = vunpack.c.h.b16 %v101
    %v508 = vunpack.c.l.b16 %v102
    %v509 = vunpack.c.h.b16 %v102
    %v510 = vunpack.c.l.b16 %v103
    %v511 = vunpack.c.h.b16 %v103
    %v512 = vunpack.c.l.b16 %v104
    %v513 = vunpack.c.h.b16 %v104
    %v514 = vunpack.c.l.b16 %v105
    %v515 = vunpack.c.h.b16 %v105
    %v516 = vunpack.c.l.b16 %v106
    %v517 = vunpack.c.h.b16 %v106
    %v518 = vunpack.c.l.b16 %v107
    %v519 = vunpack.c.h.b16 %v107
    %v520 = vunpack.c.l.b16 %v108
    %v521 = vunpack.c.h.b16 %v108
    %v522 = vunpack.c.l.b16 %v109
    %v523 = vunpack.c.h.b16 %v109
    %v524 = vunpack.c.l.b16 %v110
    %v525 = vunpack.c.h.b16 %v110
    %v526 = vunpack.c.l.b16 %v111
    %v527 = vunpack.c.h.b16 %v111
    %v528 = vunpack.c.l.b16 %v112
    %v529 = vunpack.c.h.b16 %v112
    %v530 = vunpack.c.l.b16 %v113
    %v531 = vunpack.c.h.b16 %v113
    %v532 = vunpack.c.l.b16 %v114
    %v533 = vunpack.c.h.b16 %v114
    %v534 = vunpack.c.l.b16 %v115
    %v535 = vunpack.c.h.b16 %v115
    %v536 = vunpack.c.l.b16 %v116
    %v537 = vunpack.c.h.b16 %v116
    %v538 = vunpack.c.l.b16 %v117
    %v539 = vunpack.c.h.b16 %v117
    %v540 = vunpack.c.l.b16 %v118
    %v541 = vunpack.c.h.b16 %v118
    %v542 = vunpack.c.l.b16 %v119
    %v543 = vunpack.c.h.b16 %v119
    %v544 = vunpack.c.l.b16 %v120
    %v545 = vunpack.c.h.b16 %v120
    %v546 = vunpack.c.l.b16 %v121
    %v547 = vunpack.c.h.b16 %v121
    %v548 = vunpack.c.l.b16 %v122
    %v549 = vunpack.c.h.b16 %v122
    %v550 = vunpack.c.l.b16 %v123
    %v551 = vunpack.c.h.b16 %v123
    %v552 = vunpack.c.l.b16 %v124
    %v553 = vunpack.c.h.b16 %v124
    %v554 = vunpack.c.l.b16 %v125
    %v555 = vunpack.c.h.b16 %v125
    %v556 = vunpack.c.l.b16 %v126
    %v557 = vunpack.c.h.b16 %v126
    %v558 = vunpack.c.l.b16 %v127
    %v559 = vunpack.c.h.b16 %v127
    %v560 = vunpack.c.l.b16 %v128
    %v561 = vunpack.c.h.b16 %v128
    %v562 = vunpack.c.l.b16 %v129
    %v563 = vunpack.c.h.b16 %v129
    %v564 = vunpack.c.l.b16 %v130
    %v565 = vunpack.c.h.b16 %v130
    %v566 = vunpack.c.l.b16 %v131
    %v567 = vunpack.c.h.b16 %v131
    %v568 = vunpack.c.l.b16 %v132
    %v569 = vunpack.c.h.b16 %v132
    %v570 = vunpack.c.l.b16 %v133
    %v571 = vunpack.c.h.b16 %v133
    %v572 = vunpack.c.l.b16 %v134
    %v573 = vunpack.c.h.b16 %v134
    %v574 = vunpack.c.l.b16 %v135
    %v575 = vunpack.c.h.b16 %v135
    %v576 = vunpack.c.l.b16 %v136
    %v577 = vunpack.c.h.b16 %v136
    %v578 = vunpack.c.l.b16 %v137
    %v579 = vunpack.c.h.b16 %v137
    %v580 = vunpack.c.l.b16 %v138
    %v581 = vunpack.c.h.b16 %v138
    %v582 = vunpack.c.l.b16 %v139
    %v583 = vunpack.c.h.b16 %v139
    %v584 = vunpack.c.l.b16 %v140
    %v585 = vunpack.c.h.b16 %v140
    %v586 = vunpack.c.l.b16 %v141
    %v587 = vunpack.c.h.b16 %v141
    %v588 = vunpack.c.l.b16 %v142
    %v589 = vunpack.c.h.b16 %v142
    %v590 = vunpack.c.l.b16 %v143
    %v591 = vunpack.c.h.b16 %v143
    %v592 = vunpack.c.l.b16 %v144
    %v593 = vunpack.c.h.b16 %v144
    %v594 = vunpack.c.l.b16 %v145
    %v595 = vunpack.c.h.b16 %v145
    %v596 = vunpack.c.l.b16 %v146
    %v597 = vunpack.c.h.b16 %v146
    %v598 = vunpack.c.l.b16 %v147
    %v599 = vunpack.c.h.b16 %v147
    %v600 = vunpack.c.l.b16 %v148
    %v601 = vunpack.c.h.b16 %v148
    %v602 = vunpack.c.l.b16 %v149
    %v603 = vunpack.c.h.b16 %v149
    %v604 = vunpack.c.l.b16 %v150
    %v605 = vunpack.c.h.b16 %v150
    %v606 = vunpack.c.l.b16 %v151
    %v607 = vunpack.c.h.b16 %v151
    %v608 = vunpack.c.l.b16 %v152
    %v609 = vunpack.c.h.b16 %v152
    %v610 = vunpack.c.l.b16 %v153
    %v611 = vunpack.c.h.b16 %v153
    %v612 = vunpack.c.l.b16 %v154
    %v613 = vunpack.c.h.b16 %v154
    %v614 = vunpack.c.l.b16 %v155
    %v615 = vunpack.c.h.b16 %v155
    %v616 = vunpack.c.l.b16 %v156
    %v617 = vunpack.c.h.b16 %v156
    %v618 = vunpack.c.l.b16 %v157
    %v619 = vunpack.c.h.b16 %v157
    %v620 = vunpack.c.l.b16 %v158
    %v621 = vunpack.c.h.b16 %v158
    %v622 = vunpack.c.l.b16 %v159
    %v623 = vunpack.c.h.b16 %v159
    %v624 = vunpack.c.l.b16 %v160
    %v625 = vunpack.c.h.b16 %v160
    %v626 = vunpack.c.l.b16 %v161
    %v627 = vunpack.c.h.b16 %v161
    %v628 = vunpack.c.l.b16 %v162
    %v629 = vunpack.c.h.b16 %v162
    %v630 = vunpack.c.l.b16 %v163
    %v631 = vunpack.c.h.b16 %v163
    %v632 = vunpack.c.l.b16 %v164
    %v633 = vunpack.c.h.b16 %v164
    %v634 = vunpack.c.l.b16 %v165
    %v635 = vunpack.c.h.b16 %v165
    %v636 = vunpack.c.l.b16 %v166
    %v637 = vunpack.c.h.b16 %v166
    %v638 = vunpack.c.l.b16 %v167
    %v639 = vunpack.c.h.b16 %v167
    %v640 = vunpack.c.l.b16 %v168
    %v641 = vunpack.c.h.b16 %v168
    %v642 = vunpack.c.l.b16 %v169
    %v643 = vunpack.c.h.b16 %v169
    %v644 = vunpack.c.l.b16 %v170
    %v645 = vunpack.c.h.b16 %v170
    %v646 = vunpack.c.l.b16 %v171
    %v647 = vunpack.c.h.b16 %v171
    %v648 = vunpack.c.l.b16 %v172
    %v649 = vunpack.c.h.b16 %v172
    %v650 = vunpack.c.l.b16 %v173
    %v651 = vunpack.c.h.b16 %v173
    %v652 = vunpack.c.l.b16 %v174
    %v653 = vunpack.c.h.b16 %v174
    %v654 = vunpack.c.l.b16 %v175
    %v655 = vunpack.c.h.b16 %v175
    %v656 = vunpack.c.l.b16 %v176
    %v657 = vunpack.c.h.b16 %v176
    %v658 = vunpack.c.l.b16 %v177
    %v659 = vunpack.c.h.b16 %v177
    %v660 = vunpack.c.l.b16 %v178
    %v661 = vunpack.c.h.b16 %v178
    %v662 = vunpack.c.l.b16 %v179
    %v663 = vunpack.c.h.b16 %v179
    %v664 = vunpack.c.l.b16 %v180
    %v665 = vunpack.c.h.b16 %v180
    %v666 = vunpack.c.l.b16 %v181
    %v667 = vunpack.c.h.b16 %v181
    %v668 = vunpack.c.l.b16 %v182
    %v669 = vunpack.c.h.b16 %v182
    %v670 = vunpack.c.l.b16 %v183
    %v671 = vunpack.c.h.b16 %v183
    %v672 = vunpack.c.l.b16 %v184
    %v673 = vunpack.c.h.b16 %v184
    %v674 = vunpack.c.l.b16 %v185
    %v675 = vunpack.c.h.b16 %v185
    %v676 = vunpack.c.l.b16 %v186
    %v677 = vunpack.c.h.b16 %v186
    %v678 = vunpack.c.l.b16 %v187
    %v679 = vunpack.c.h.b16 %v187
    %v680 = vunpack.c.l.b16 %v188
    %v681 = vunpack.c.h.b16 %v188
    %v682 = vunpack.c.l.b16 %v189
    %v683 = vunpack.c.h.b16 %v189
    %v684 = vunpack.c.l.b16 %v190
    %v685 = vunpack.c.h.b16 %v190
    %v686 = vunpack.c.l.b16 %v191
    %v687 = vunpack.c.h.b16 %v191
    %v688 = vunpack.c.l.b16 %v192
    %v689 = vunpack.c.h.b16 %v192
    %v690 = vunpack.c.l.b16 %v193
    %v691 = vunpack.c.h.b16 %v193
    %v692 = vunpack.c.l.b16 %v194
    %v693 = vunpack.c.h.b16 %v194
    %v694 = vunpack.c.l.b16 %v195
    %v695 = vunpack.c.h.b16 %v195
    %v696 = vunpack.c.l.b16 %v196
    %v697 = vunpack.c.h.b16 %v196
    %v698 = vunpack.c.l.b16 %v197
    %v699 = vunpack.c.h.b16 %v197
    %v700 = vunpack.c.l.b16 %v198
    %v701 = vunpack.c.h.b16 %v198
    %v702 = vunpack.c.l.b16 %v199
    %v703 = vunpack.c.h.b16 %v199
    %v704 = vunpack.c.l.b16 %v200
    %v705 = vunpack.c.h.b16 %v200
    %v706 = vunpack.c.l.b16 %v201
    %v707 = vunpack.c.h.b16 %v201
    %v708 = vunpack.c.l.b16 %v202
    %v709 = vunpack.c.h.b16 %v202
    %v710 = vunpack.c.l.b16 %v203
    %v711 = vunpack.c.h.b16 %v203
    %v712 = vunpack.c.l.b16 %v204
    %v713 = vunpack.c.h.b16 %v204
    %v714 = vunpack.c.l.b16 %v205
    %v715 = vunpack.c.h.b16 %v205
    %v716 = vunpack.c.l.b16 %v206
    %v717 = vunpack.c.h.b16 %v206
    %v718 = vunpack.c.l.b16 %v207
    %v719 = vunpack.c.h.b16 %v207
    %v720 = vunpack.c.l.b16 %v208
    %v721 = vunpack.c.h.b16 %v208
    %v722 = vunpack.c.l.b16 %v209
    %v723 = vunpack.c.h.b16 %v209
    %v724 = vunpack.c.l.b16 %v210
    %v725 = vunpack.c.h.b16 %v210
    %v726 = vunpack.c.l.b16 %v211
    %v727 = vunpack.c.h.b16 %v211
    %v728 = vunpack.c.l.b16 %v212
    %v729 = vunpack.c.h.b16 %v212
    %v730 = vunpack.c.l.b16 %v213
    %v731 = vunpack.c.h.b16 %v213
    %v732 = vunpack.c.l.b16 %v214
    %v733 = vunpack.c.h.b16 %v214
    %v734 = vunpack.c.l.b16 %v215
    %v735 = vunpack.c.h.b16 %v215
    %v736 = vunpack.c.l.b16 %v216
    %v737 = vunpack.c.h.b16 %v216
    %v738 = vunpack.c.l.b16 %v217
    %v739 = vunpack.c.h.b16 %v217
    %v740 = vunpack.c.l.b16 %v218
    %v741 = vunpack.c.h.b16 %v218
    %v742 = vunpack.c.l.b16 %v219
    %v743 = vunpack.c.h.b16 %v219
    %v744 = vunpack.c.l.b16 %v220
    %v745 = vunpack.c.h.b16 %v220
    %v746 = vunpack.c.l.b16 %v221
    %v747 = vunpack.c.h.b16 %v221
    %v748 = vunpack.c.l.b16 %v222
    %v749 = vunpack.c.h.b16 %v222
    %v750 = vunpack.c.l.b16 %v223
    %v751 = vunpack.c.h.b16 %v223
    %v752 = vunpack.c.l.b16 %v224
    %v753 = vunpack.c.h.b16 %v224
    %v754 = vunpack.c.l.b16 %v225
    %v755 = vunpack.c.h.b16 %v225
    %v756 = vunpack.c.l.b16 %v226
    %v757 = vunpack.c.h.b16 %v226
    %v758 = vunpack.c.l.b16 %v227
    %v759 = vunpack.c.h.b16 %v227
    %v760 = vunpack.c.l.b16 %v228
    %v761 = vunpack.c.h.b16 %v228
    %v762 = vunpack.c.l.b16 %v229
    %v763 = vunpack.c.h.b16 %v229
    %v764 = vunpack.c.l.b16 %v230
    %v765 = vunpack.c.h.b16 %v230
    %v766 = vunpack.c.l.b16 %v231
    %v767 = vunpack.c.h.b16 %v231
    %v768 = vunpack.c.l.b16 %v232
    %v769 = vunpack.c.h.b16 %v232
    %v770 = vunpack.c.l.b16 %v233
    %v771 = vunpack.c.h.b16 %v233
    %v772 = vunpack.c.l.b16 %v234
    %v773 = vunpack.c.h.b16 %v234
    %v774 = vunpack.c.l.b16 %v235
    %v775 = vunpack.c.h.b16 %v235
    %v776 = vunpack.c.l.b16 %v236
    %v777 = vunpack.c.h.b16 %v236
    %v778 = vunpack.c.l.b16 %v237
    %v779 = vunpack.c.h.b16 %v237
    %v780 = vunpack.c.l.b16 %v238
    %v781 = vunpack.c.h.b16 %v238
    %v782 = vunpack.c.l.b16 %v239
    %v783 = vunpack.c.h.b16 %v239
    %v784 = vunpack.c.l.b16 %v240
    %v785 = vunpack.c.h.b16 %v240
    %v786 = vunpack.c.l.b16 %v241
    %v787 = vunpack.c.h.b16 %v241
    %v788 = vunpack.c.l.b16 %v242
    %v789 = vunpack.c.h.b16 %v242
    %v790 = vunpack.c.l.b16 %v243
    %v791 = vunpack.c.h.b16 %v243
    %v792 = vunpack.c.l.b16 %v244
    %v793 = vunpack.c.h.b16 %v244
    %v794 = vunpack.c.l.b16 %v245
    %v795 = vunpack.c.h.b16 %v245
    %v796 = vunpack.c.l.b16 %v246
    %v797 = vunpack.c.h.b16 %v246
    %v798 = vunpack.c.l.b16 %v247
    %v799 = vunpack.c.h.b16 %v247
    %v800 = vunpack.c.l.b16 %v248
    %v801 = vunpack.c.h.b16 %v248
    %v802 = vunpack.c.l.b16 %v249
    %v803 = vunpack.c.h.b16 %v249
    %v804 = vunpack.c.l.b16 %v250
    %v805 = vunpack.c.h.b16 %v250
    %v806 = vunpack.c.l.b16 %v251
    %v807 = vunpack.c.h.b16 %v251
    %v808 = vunpack.c.l.b16 %v252
    %v809 = vunpack.c.h.b16 %v252
    %v810 = vunpack.c.l.b16 %v253
    %v811 = vunpack.c.h.b16 %v253
    %v812 = vunpack.c.l.b16 %v254
    %v813 = vunpack.c.h.b16 %v254
    %v814 = vunpack.c.l.b16 %v255
    %v815 = vunpack.c.h.b16 %v255
    %v816 = vunpack.c.l.b16 %v256
    %v817 = vunpack.c.h.b16 %v256
    %v818 = vunpack.c.l.b16 %v257
    %v819 = vunpack.c.h.b16 %v257
    %v820 = vunpack.c.l.b16 %v258
    %v821 = vunpack.c.h.b16 %v258
    %v822 = vunpack.c.l.b16 %v259
    %v823 = vunpack.c.h.b16 %v259
    %v824 = vunpack.c.l.b16 %v260
    %v825 = vunpack.c.h.b16 %v260
    %v826 = vunpack.c.l.b16 %v261
    %v827 = vunpack.c.h.b16 %v261
    %v828 = vunpack.c.l.b16 %v262
    %v829 = vunpack.c.h.b16 %v262
    %v830 = vunpack.c.l.b16 %v263
    %v831 = vunpack.c.h.b16 %v263
    %v832 = vunpack.c.l.b16 %v264
    %v833 = vunpack.c.h.b16 %v264
    %v834 = vunpack.c.l.b16 %v265
    %v835 = vunpack.c.h.b16 %v265
    %v836 = vunpack.c.l.b16 %v266
    %v837 = vunpack.c.h.b16 %v266
    %v838 = vunpack.c.l.b16 %v267
    %v839 = vunpack.c.h.b16 %v267
    %v840 = vunpack.c.l.b16 %v268
    %v841 = vunpack.c.h.b16 %v268
    %v842 = vunpack.c.l.b16 %v269
    %v843 = vunpack.c.h.b16 %v269
    %v844 = vunpack.c.l.b16 %v270
    %v845 = vunpack.c.h.b16 %v270
    %v846 = vunpack.c.l.b16 %v271
    %v847 = vunpack.c.h.b16 %v271
    %v848 = vunpack.c.l.b16 %v272
    %v849 = vunpack.c.h.b16 %v272
    %v850 = vunpack.c.l.b16 %v273
    %v851 = vunpack.c.h.b16 %v273
    %v852 = vunpack.c.l.b16 %v274
    %v853 = vunpack.c.h.b16 %v274
    %v854 = vunpack.c.l.b16 %v275
    %v855 = vunpack.c.h.b16 %v275
    %v856 = vunpack.c.l.b16 %v276
    %v857 = vunpack.c.h.b16 %v276
    %v858 = vunpack.c.l.b16 %v277
    %v859 = vunpack.c.h.b16 %v277
    %v860 = vunpack.c.l.b16 %v278
    %v861 = vunpack.c.h.b16 %v278
    %v862 = vunpack.c.l.b16 %v279
    %v863 = vunpack.c.h.b16 %v279
    %v864 = vunpack.c.l.b16 %v280
    %v865 = vunpack.c.h.b16 %v280
    %v866 = vunpack.c.l.b16 %v281
    %v867 = vunpack.c.h.b16 %v281
    %v868 = vunpack.c.l.b16 %v282
    %v869 = vunpack.c.h.b16 %v282
    %v870 = vunpack.c.l.b16 %v283
    %v871 = vunpack.c.h.b16 %v283
    %v872 = vpack.c.b16 %v484, %v480
    %v873 = vpack.c.b16 %v485, %v481
    %v874 = vpack.c.b16 %v486, %v482
    %v875 = vpack.c.b16 %v487, %v483
    %v876 = vpack.c.b16 %v492, %v488
    %v877 = vpack.c.b16 %v493, %v489
    %v878 = vpack.c.b16 %v494, %v490
    %v879 = vpack.c.b16 %v495, %v491
    %v880 = vpack.c.b16 %v500, %v496
    %v881 = vpack.c.b16 %v501, %v497
    %v882 = vpack.c.b16 %v502, %v498
    %v883 = vpack.c.b16 %v503, %v499
    %v884 = vpack.c.b16 %v508, %v504
    %v885 = vpack.c.b16 %v509, %v505
    %v886 = vpack.c.b16 %v510, %v506
    %v887 = vpack.c.b16 %v511, %v507
    %v888 = vpack.c.b16 %v516, %v512
    %v889 = vpack.c.b16 %v517, %v513
    %v890 = vpack.c.b16 %v518, %v514
    %v891 = vpack.c.b16 %v519, %v515
    %v892 = vpack.c.b16 %v524, %v520
    %v893 = vpack.c.b16 %v525, %v521
    %v894 = vpack.c.b16 %v526, %v522
    %v895 = vpack.c.b16 %v527, %v523
    %v896 = vpack.c.b16 %v532, %v528
    %v897 = vpack.c.b16 %v533, %v529
    %v898 = vpack.c.b16 %v534, %v530
    %v899 = vpack.c.b16 %v535, %v531
    %v900 = vpack.c.b16 %v540, %v536
    %v901 = vpack.c.b16 %v541, %v537
    %v902 = vpack.c.b16 %v542, %v538
    %v903 = vpack.c.b16 %v543, %v539
    %v904 = vpack.c.b16 %v548, %v544
    %v905 = vpack.c.b16 %v549, %v545
    %v906 = vpack.c.b16 %v550, %v546
    %v907 = vpack.c.b16 %v551, %v547
    %v908 = vpack.c.b16 %v556, %v552
    %v909 = vpack.c.b16 %v557, %v553
    %v910 = vpack.c.b16 %v558, %v554
    %v911 = vpack.c.b16 %v559, %v555
    %v912 = vpack.c.b16 %v564, %v560
    %v913 = vpack.c.b16 %v565, %v561
    %v914 = vpack.c.b16 %v566, %v562
    %v915 = vpack.c.b16 %v567, %v563
    %v916 = vpack.c.b16 %v572, %v568
    %v917 = vpack.c.b16 %v573, %v569
    %v918 = vpack.c.b16 %v574, %v570
    %v919 = vpack.c.b16 %v575, %v571
    %v920 = vpack.c.b16 %v580, %v576
    %v921 = vpack.c.b16 %v581, %v577
    %v922 = vpack.c.b16 %v582, %v578
    %v923 = vpack.c.b16 %v583, %v579
    %v924 = vpack.c.b16 %v588, %v584
    %v925 = vpack.c.b16 %v589, %v585
    %v926 = vpack.c.b16 %v590, %v586
    %v927 = vpack.c.b16 %v591, %v587
    %v928 = vpack.c.b16 %v596, %v592
    %v929 = vpack.c.b16 %v597, %v593
    %v930 = vpack.c.b16 %v598, %v594
    %v931 = vpack.c.b16 %v599, %v595
    %v932 = vpack.c.b16 %v604, %v600
    %v933 = vpack.c.b16 %v605, %v601
    %v934 = vpack.c.b16 %v606, %v602
    %v935 = vpack.c.b16 %v607, %v603
    %v936 = vpack.c.b16 %v612, %v608
    %v937 = vpack.c.b16 %v613, %v609
    %v938 = vpack.c.b16 %v614, %v610
    %v939 = vpack.c.b16 %v615, %v611
    %v940 = vpack.c.b16 %v620, %v616
    %v941 = vpack.c.b16 %v621, %v617
    %v942 = vpack.c.b16 %v622, %v618
    %v943 = vpack.c.b16 %v623, %v619
    %v944 = vpack.c.b16 %v628, %v624
    %v945 = vpack.c.b16 %v629, %v625
    %v946 = vpack.c.b16 %v630, %v626
    %v947 = vpack.c.b16 %v631, %v627
    %v948 = vpack.c.b16 %v636, %v632
    %v949 = vpack.c.b16 %v637, %v633
    %v950 = vpack.c.b16 %v638, %v634
    %v951 = vpack.c.b16 %v639, %v635
    %v952 = vpack.c.b16 %v644, %v640
    %v953 = vpack.c.b16 %v645, %v641
    %v954 = vpack.c.b16 %v646, %v642
    %v955 = vpack.c.b16 %v647, %v643
    %v956 = vpack.c.b16 %v652, %v648
    %v957 = vpack.c.b16 %v653, %v649
    %v958 = vpack.c.b16 %v654, %v650
    %v959 = vpack.c.b16 %v655, %v651
    %v960 = vpack.c.b16 %v660, %v656
    %v961 = vpack.c.b16 %v661, %v657
    %v962 = vpack.c.b16 %v662, %v658
    %v963 = vpack.c.b16 %v663, %v659
    %v964 = vpack.c.b16 %v668, %v664
    %v965 = vpack.c.b16 %v669, %v665
    %v966 = vpack.c.b16 %v670, %v666
    %v967 = vpack.c.b16 %v671, %v667
    %v968 = vpack.c.b16 %v676, %v672
    %v969 = vpack.c.b16 %v677, %v673
    %v970 = vpack.c.b16 %v678, %v674
    %v971 = vpack.c.b16 %v679, %v675
    %v972 = vpack.c.b16 %v684, %v680
    %v973 = vpack.c.b16 %v685, %v681
    %v974 = vpack.c.b16 %v686, %v682
    %v975 = vpack.c.b16 %v687, %v683
    %v976 = vpack.c.b16 %v692, %v688
    %v977 = vpack.c.b16 %v693, %v689
    %v978 = vpack.c.b16 %v694, %v690
    %v979 = vpack.c.b16 %v695, %v691
    %v980 = vpack.c.b16 %v700, %v696
    %v981 = vpack.c.b16 %v701, %v697
    %v982 = vpack.c.b16 %v702, %v698
    %v983 = vpack.c.b16 %v703, %v699
    %v984 = vpack.c.b16 %v708, %v704
    %v985 = vpack.c.b16 %v709, %v705
    %v986 = vpack.c.b16 %v710, %v706
    %v987 = vpack.c.b16 %v711, %v707
    %v988 = vpack.c.b16 %v716, %v712
    %v989 = vpack.c.b16 %v717, %v713
    %v990 = vpack.c.b16 %v718, %v714
    %v991 = vpack.c.b16 %v719, %v715
    %v992 = vpack.c.b16 %v724, %v720
    %v993 = vpack.c.b16 %v725, %v721
    %v994 = vpack.c.b16 %v726, %v722
    %v995 = vpack.c.b16 %v727, %v723
    %v996 = vpack.c.b16 %v732, %v728
    %v997 = vpack.c.b16 %v733, %v729
    %v998 = vpack.c.b16 %v734, %v730
    %v999 = vpack.c.b16 %v735, %v731
    %v1000 = vpack.c.b16 %v740, %v736
    %v1001 = vpack.c.b16 %v741, %v737
    %v1002 = vpack.c.b16 %v742, %v738
    %v1003 = vpack.c.b16 %v743, %v739
    %v1004 = vpack.c.b16 %v748, %v744
    %v1005 = vpack.c.b16 %v749, %v745
    %v1006 = vpack.c.b16 %v750, %v746
    %v1007 = vpack.c.b16 %v751, %v747
    %v1008 = vpack.c.b16 %v756, %v752
    %v1009 = vpack.c.b16 %v757, %v753
    %v1010 = vpack.c.b16 %v758, %v754
    %v1011 = vpack.c.b16 %v759, %v755
    %v1012 = vpack.c.b16 %v764, %v760
    %v1013 = vpack.c.b16 %v765, %v761
    %v1014 = vpack.c.b16 %v766, %v762
    %v1015 = vpack.c.b16 %v767, %v763
    %v1016 = vpack.c.b16 %v772, %v768
    %v1017 = vpack.c.b16 %v773, %v769
    %v1018 = vpack.c.b16 %v774, %v770
    %v1019 = vpack.c.b16 %v775, %v771
    %v1020 = vpack.c.b16 %v780, %v776
    %v1021 = vpack.c.b16 %v781, %v777
    %v1022 = vpack.c.b16 %v782, %v778
    %v1023 = vpack.c.b16 %v783, %v779
    %v1024 = vpack.c.b16 %v788, %v784
    %v1025 = vpack.c.b16 %v789, %v785
    %v1026 = vpack.c.b16 %v790, %v786
    %v1027 = vpack.c.b16 %v791, %v787
    %v1028 = vpack.c.b16 %v796, %v792
    %v1029 = vpack.c.b16 %v797, %v793
    %v1030 = vpack.c.b16 %v798, %v794
    %v1031 = vpack.c.b16 %v799, %v795
    %v1032 = vpack.c.b16 %v804, %v800
    %v1033 = vpack.c.b16 %v805, %v801
    %v1034 = vpack.c.b16 %v806, %v802
    %v1035 = vpack.c.b16 %v807, %v803
    %v1036 = vpack.c.b16 %v812, %v808
    %v1037 = vpack.c.b16 %v813, %v809
    %v1038 = vpack.c.b16 %v814, %v810
    %v1039 = vpack.c.b16 %v815, %v811
    %v1040 = vpack.c.b16 %v820, %v816
    %v1041 = vpack.c.b16 %v821, %v817
    %v1042 = vpack.c.b16 %v822, %v818
    %v1043 = vpack.c.b16 %v823, %v819
    %v1044 = vpack.c.b16 %v828, %v824
    %v1045 = vpack.c.b16 %v829, %v825
    %v1046 = vpack.c.b16 %v830, %v826
    %v1047 = vpack.c.b16 %v831, %v827
    %v1048 = vpack.c.b16 %v836, %v832
    %v1049 = vpack.c.b16 %v837, %v833
    %v1050 = vpack.c.b16 %v838, %v834
    %v1051 = vpack.c.b16 %v839, %v835
    %v1052 = vpack.c.b16 %v844, %v840
    %v1053 = vpack.c.b16 %v845, %v841
    %v1054 = vpack.c.b16 %v846, %v842
    %v1055 = vpack.c.b16 %v847, %v843
    %v1056 = vpack.c.b16 %v852, %v848
    %v1057 = vpack.c.b16 %v853, %v849
    %v1058 = vpack.c.b16 %v854, %v850
    %v1059 = vpack.c.b16 %v855, %v851
    %v1060 = vpack.c.b16 %v860, %v856
    %v1061 = vpack.c.b16 %v861, %v857
    %v1062 = vpack.c.b16 %v862, %v858
    %v1063 = vpack.c.b16 %v863, %v859
    %v1064 = vpack.c.b16 %v868, %v864
    %v1065 = vpack.c.b16 %v869, %v865
    %v1066 = vpack.c.b16 %v870, %v866
    %v1067 = vpack.c.b16 %v871, %v867
    %vm1264 = vcmask 130048
    %v1266 = vsel %vm1264, %v86, 0
    %1268 = vmatprep.subr.bf16.mxu0 %v901
    %1269 = vmatpush1.bf16.msra.mxu0 %v900
    %1270 = vmatprep.subr.bf16.mxu0 %v897
    %1271 = vmatpush1.bf16.msra.mxu0 %v896
    %1272 = vmatprep.subr.bf16.mxu0 %v893
    %1273 = vmatpush1.bf16.msra.mxu0 %v892
    %1274 = vmatprep.subr.bf16.mxu0 %v889
    %1275 = vmatpush1.bf16.msra.mxu0 %v888
    %1276 = vmatprep.subr.bf16.mxu0 %v885
    %1277 = vmatpush1.bf16.msra.mxu0 %v884
    %1278 = vmatprep.subr.bf16.mxu0 %v881
    %1279 = vmatpush1.bf16.msra.mxu0 %v880
    %1280 = vmatprep.subr.bf16.mxu0 %v877
    %1281 = vmatpush1.bf16.msra.mxu0 %v876
    %1282 = vmatprep.subr.bf16.mxu0 %v873
    %1283 = vmatpush1.bf16.msra.mxu0 %v872
    %1284 = vmatprep.subr.bf16.mxu0 %v933
    %1285 = vmatpush2.bf16.msra.mxu0 %v932
    %1286 = vmatprep.subr.bf16.mxu0 %v929
    %1287 = vmatpush2.bf16.msra.mxu0 %v928
    %1288 = vmatprep.subr.bf16.mxu0 %v925
    %1289 = vmatpush2.bf16.msra.mxu0 %v924
    %1290 = vmatprep.subr.bf16.mxu0 %v921
    %1291 = vmatpush2.bf16.msra.mxu0 %v920
    %1292 = vmatprep.subr.bf16.mxu0 %v917
    %1293 = vmatpush2.bf16.msra.mxu0 %v916
    %1294 = vmatprep.subr.bf16.mxu0 %v913
    %1295 = vmatpush2.bf16.msra.mxu0 %v912
    %1296 = vmatprep.subr.bf16.mxu0 %v909
    %1297 = vmatpush2.bf16.msra.mxu0 %v908
    %1298 = vmatprep.subr.bf16.mxu0 %v905
    %1299 = vmatpush2.bf16.msra.mxu0 %v904
    %1300 = vmatprep.mubr.bf16.mxu0 %v81
    %1301 = vmatmul.mubr.bf16.gmra.mxu0 %v80
    %v1302 = vpop.f32.mrf.mxu0
    %v1303 = vadd.f32 0.0, %v1302
    %v1304 = vpop.f32.mrf.mxu0
    %v1305 = vadd.f32 0.0, %v1304
    %v1306 = vpop.f32.mrf.mxu0
    %v1307 = vpop.f32.mrf.mxu0
    %1308 = vdwg.mxu0
    %1309 = vmatprep.subr.bf16.mxu0 %v965
    %1310 = vmatpush1.bf16.msra.mxu0 %v964
    %1311 = vmatprep.subr.bf16.mxu0 %v961
    %1312 = vmatpush1.bf16.msra.mxu0 %v960
    %1313 = vmatprep.subr.bf16.mxu0 %v957
    %1314 = vmatpush1.bf16.msra.mxu0 %v956
    %1315 = vmatprep.subr.bf16.mxu0 %v953
    %1316 = vmatpush1.bf16.msra.mxu0 %v952
    %1317 = vmatprep.subr.bf16.mxu0 %v949
    %1318 = vmatpush1.bf16.msra.mxu0 %v948
    %1319 = vmatprep.subr.bf16.mxu0 %v945
    %1320 = vmatpush1.bf16.msra.mxu0 %v944
    %1321 = vmatprep.subr.bf16.mxu0 %v941
    %1322 = vmatpush1.bf16.msra.mxu0 %v940
    %1323 = vmatprep.subr.bf16.mxu0 %v937
    %1324 = vmatpush1.bf16.msra.mxu0 %v936
    %1325 = vmatprep.subr.bf16.mxu0 %v997
    %1326 = vmatpush2.bf16.msra.mxu0 %v996
    %1327 = vmatprep.subr.bf16.mxu0 %v993
    %1328 = vmatpush2.bf16.msra.mxu0 %v992
    %1329 = vmatprep.subr.bf16.mxu0 %v989
    %1330 = vmatpush2.bf16.msra.mxu0 %v988
    %1331 = vmatprep.subr.bf16.mxu0 %v985
    %1332 = vmatpush2.bf16.msra.mxu0 %v984
    %1333 = vmatprep.subr.bf16.mxu0 %v981
    %1334 = vmatpush2.bf16.msra.mxu0 %v980
    %1335 = vmatprep.subr.bf16.mxu0 %v977
    %1336 = vmatpush2.bf16.msra.mxu0 %v976
    %1337 = vmatprep.subr.bf16.mxu0 %v973
    %1338 = vmatpush2.bf16.msra.mxu0 %v972
    %1339 = vmatprep.subr.bf16.mxu0 %v969
    %1340 = vmatpush2.bf16.msra.mxu0 %v968
    %1341 = vmatprep.mubr.bf16.mxu0 %v83
    %1342 = vmatmul.mubr.bf16.gmra.mxu0 %v82
    %v1343 = vpop.f32.mrf.mxu0
    %v1344 = vadd.f32 %v1303, %v1343
    %v1345 = vpop.f32.mrf.mxu0
    %v1346 = vadd.f32 %v1305, %v1345
    %v1347 = vpop.f32.mrf.mxu0
    %v1348 = vpop.f32.mrf.mxu0
    %1349 = vdwg.mxu0
    %1350 = vmatprep.subr.bf16.mxu0 %v1029
    %1351 = vmatpush1.bf16.msra.mxu0 %v1028
    %1352 = vmatprep.subr.bf16.mxu0 %v1025
    %1353 = vmatpush1.bf16.msra.mxu0 %v1024
    %1354 = vmatprep.subr.bf16.mxu0 %v1021
    %1355 = vmatpush1.bf16.msra.mxu0 %v1020
    %1356 = vmatprep.subr.bf16.mxu0 %v1017
    %1357 = vmatpush1.bf16.msra.mxu0 %v1016
    %1358 = vmatprep.subr.bf16.mxu0 %v1013
    %1359 = vmatpush1.bf16.msra.mxu0 %v1012
    %1360 = vmatprep.subr.bf16.mxu0 %v1009
    %1361 = vmatpush1.bf16.msra.mxu0 %v1008
    %1362 = vmatprep.subr.bf16.mxu0 %v1005
    %1363 = vmatpush1.bf16.msra.mxu0 %v1004
    %1364 = vmatprep.subr.bf16.mxu0 %v1001
    %1365 = vmatpush1.bf16.msra.mxu0 %v1000
    %1366 = vmatprep.subr.bf16.mxu0 %v1061
    %1367 = vmatpush2.bf16.msra.mxu0 %v1060
    %1368 = vmatprep.subr.bf16.mxu0 %v1057
    %1369 = vmatpush2.bf16.msra.mxu0 %v1056
    %1370 = vmatprep.subr.bf16.mxu0 %v1053
    %1371 = vmatpush2.bf16.msra.mxu0 %v1052
    %1372 = vmatprep.subr.bf16.mxu0 %v1049
    %1373 = vmatpush2.bf16.msra.mxu0 %v1048
    %1374 = vmatprep.subr.bf16.mxu0 %v1045
    %1375 = vmatpush2.bf16.msra.mxu0 %v1044
    %1376 = vmatprep.subr.bf16.mxu0 %v1041
    %1377 = vmatpush2.bf16.msra.mxu0 %v1040
    %1378 = vmatprep.subr.bf16.mxu0 %v1037
    %1379 = vmatpush2.bf16.msra.mxu0 %v1036
    %1380 = vmatprep.subr.bf16.mxu0 %v1033
    %1381 = vmatpush2.bf16.msra.mxu0 %v1032
    %1382 = vmatprep.mubr.bf16.mxu0 %v85
    %1383 = vmatmul.mubr.bf16.gmra.mxu0 %v84
    %v1384 = vpop.f32.mrf.mxu0
    %v1385 = vadd.f32 %v1344, %v1384
    %v1386 = vpop.f32.mrf.mxu0
    %v1387 = vadd.f32 %v1346, %v1386
    %v1388 = vpop.f32.mrf.mxu0
    %v1389 = vpop.f32.mrf.mxu0
    %1390 = vdwg.mxu0
    %1391 = vmatprep.subr.bf16.mxu0 0
    %1392 = vmatpush1.bf16.msra.mxu0 0
    %1393 = vmatprep.subr.bf16.mxu0 0
    %1394 = vmatpush1.bf16.msra.mxu0 0
    %1395 = vmatprep.subr.bf16.mxu0 0
    %1396 = vmatpush1.bf16.msra.mxu0 0
    %1397 = vmatprep.subr.bf16.mxu0 0
    %1398 = vmatpush1.bf16.msra.mxu0 0
    %1399 = vmatprep.subr.bf16.mxu0 0
    %1400 = vmatpush1.bf16.msra.mxu0 0
    %1401 = vmatprep.subr.bf16.mxu0 0
    %1402 = vmatpush1.bf16.msra.mxu0 0
    %1403 = vmatprep.subr.bf16.mxu0 0
    %1404 = vmatpush1.bf16.msra.mxu0 0
    %1405 = vmatprep.subr.bf16.mxu0 %v1065
    %1406 = vmatpush1.bf16.msra.mxu0 %v1064
    %1407 = vmatprep.subr.bf16.mxu0 0
    %1408 = vmatpush2.bf16.msra.mxu0 0
    %1409 = vmatprep.subr.bf16.mxu0 0
    %1410 = vmatpush2.bf16.msra.mxu0 0
    %1411 = vmatprep.subr.bf16.mxu0 0
    %1412 = vmatpush2.bf16.msra.mxu0 0
    %1413 = vmatprep.subr.bf16.mxu0 0
    %1414 = vmatpush2.bf16.msra.mxu0 0
    %1415 = vmatprep.subr.bf16.mxu0 0
    %1416 = vmatpush2.bf16.msra.mxu0 0
    %1417 = vmatprep.subr.bf16.mxu0 0
    %1418 = vmatpush2.bf16.msra.mxu0 0
    %1419 = vmatprep.subr.bf16.mxu0 0
    %1420 = vmatpush2.bf16.msra.mxu0 0
    %1421 = vmatprep.subr.bf16.mxu0 0
    %1422 = vmatpush2.bf16.msra.mxu0 0
    %1423 = vmatprep.mubr.bf16.mxu0 0
    %1424 = vmatmul.mubr.bf16.gmra.mxu0 %v1266
    %v1425 = vpop.f32.mrf.mxu0
    %v1426 = vadd.f32 %v1385, %v1425
    %v1427 = vpop.f32.mrf.mxu0
    %v1428 = vadd.f32 %v1387, %v1427
    %v1429 = vpop.f32.mrf.mxu0
    %v1430 = vpop.f32.mrf.mxu0
    %1431 = vdwg.mxu0
    %1432 = vmatprep.subr.bf16.mxu0 %v903
    %1433 = vmatpush1.bf16.msra.mxu0 %v902
    %1434 = vmatprep.subr.bf16.mxu0 %v899
    %1435 = vmatpush1.bf16.msra.mxu0 %v898
    %1436 = vmatprep.subr.bf16.mxu0 %v895
    %1437 = vmatpush1.bf16.msra.mxu0 %v894
    %1438 = vmatprep.subr.bf16.mxu0 %v891
    %1439 = vmatpush1.bf16.msra.mxu0 %v890
    %1440 = vmatprep.subr.bf16.mxu0 %v887
    %1441 = vmatpush1.bf16.msra.mxu0 %v886
    %1442 = vmatprep.subr.bf16.mxu0 %v883
    %1443 = vmatpush1.bf16.msra.mxu0 %v882
    %1444 = vmatprep.subr.bf16.mxu0 %v879
    %1445 = vmatpush1.bf16.msra.mxu0 %v878
    %1446 = vmatprep.subr.bf16.mxu0 %v875
    %1447 = vmatpush1.bf16.msra.mxu0 %v874
    %1448 = vmatprep.subr.bf16.mxu0 %v935
    %1449 = vmatpush2.bf16.msra.mxu0 %v934
    %1450 = vmatprep.subr.bf16.mxu0 %v931
    %1451 = vmatpush2.bf16.msra.mxu0 %v930
    %1452 = vmatprep.subr.bf16.mxu0 %v927
    %1453 = vmatpush2.bf16.msra.mxu0 %v926
    %1454 = vmatprep.subr.bf16.mxu0 %v923
    %1455 = vmatpush2.bf16.msra.mxu0 %v922
    %1456 = vmatprep.subr.bf16.mxu0 %v919
    %1457 = vmatpush2.bf16.msra.mxu0 %v918
    %1458 = vmatprep.subr.bf16.mxu0 %v915
    %1459 = vmatpush2.bf16.msra.mxu0 %v914
    %1460 = vmatprep.subr.bf16.mxu0 %v911
    %1461 = vmatpush2.bf16.msra.mxu0 %v910
    %1462 = vmatprep.subr.bf16.mxu0 %v907
    %1463 = vmatpush2.bf16.msra.mxu0 %v906
    %1464 = vmatprep.mubr.bf16.mxu0 %v81
    %1465 = vmatmul.mubr.bf16.gmra.mxu0 %v80
    %v1466 = vpop.f32.mrf.mxu0
    %v1467 = vadd.f32 0.0, %v1466
    %v1468 = vpop.f32.mrf.mxu0
    %v1469 = vadd.f32 0.0, %v1468
    %v1470 = vpop.f32.mrf.mxu0
    %v1471 = vpop.f32.mrf.mxu0
    %1472 = vdwg.mxu0
    %1473 = vmatprep.subr.bf16.mxu0 %v967
    %1474 = vmatpush1.bf16.msra.mxu0 %v966
    %1475 = vmatprep.subr.bf16.mxu0 %v963
    %1476 = vmatpush1.bf16.msra.mxu0 %v962
    %1477 = vmatprep.subr.bf16.mxu0 %v959
    %1478 = vmatpush1.bf16.msra.mxu0 %v958
    %1479 = vmatprep.subr.bf16.mxu0 %v955
    %1480 = vmatpush1.bf16.msra.mxu0 %v954
    %1481 = vmatprep.subr.bf16.mxu0 %v951
    %1482 = vmatpush1.bf16.msra.mxu0 %v950
    %1483 = vmatprep.subr.bf16.mxu0 %v947
    %1484 = vmatpush1.bf16.msra.mxu0 %v946
    %1485 = vmatprep.subr.bf16.mxu0 %v943
    %1486 = vmatpush1.bf16.msra.mxu0 %v942
    %1487 = vmatprep.subr.bf16.mxu0 %v939
    %1488 = vmatpush1.bf16.msra.mxu0 %v938
    %1489 = vmatprep.subr.bf16.mxu0 %v999
    %1490 = vmatpush2.bf16.msra.mxu0 %v998
    %1491 = vmatprep.subr.bf16.mxu0 %v995
    %1492 = vmatpush2.bf16.msra.mxu0 %v994
    %1493 = vmatprep.subr.bf16.mxu0 %v991
    %1494 = vmatpush2.bf16.msra.mxu0 %v990
    %1495 = vmatprep.subr.bf16.mxu0 %v987
    %1496 = vmatpush2.bf16.msra.mxu0 %v986
    %1497 = vmatprep.subr.bf16.mxu0 %v983
    %1498 = vmatpush2.bf16.msra.mxu0 %v982
    %1499 = vmatprep.subr.bf16.mxu0 %v979
    %1500 = vmatpush2.bf16.msra.mxu0 %v978
    %1501 = vmatprep.subr.bf16.mxu0 %v975
    %1502 = vmatpush2.bf16.msra.mxu0 %v974
    %1503 = vmatprep.subr.bf16.mxu0 %v971
    %1504 = vmatpush2.bf16.msra.mxu0 %v970
    %1505 = vmatprep.mubr.bf16.mxu0 %v83
    %1506 = vmatmul.mubr.bf16.gmra.mxu0 %v82
    %v1507 = vpop.f32.mrf.mxu0
    %v1508 = vadd.f32 %v1467, %v1507
    %v1509 = vpop.f32.mrf.mxu0
    %v1510 = vadd.f32 %v1469, %v1509
    %v1511 = vpop.f32.mrf.mxu0
    %v1512 = vpop.f32.mrf.mxu0
    %1513 = vdwg.mxu0
    %1514 = vmatprep.subr.bf16.mxu0 %v1031
    %1515 = vmatpush1.bf16.msra.mxu0 %v1030
    %1516 = vmatprep.subr.bf16.mxu0 %v1027
    %1517 = vmatpush1.bf16.msra.mxu0 %v1026
    %1518 = vmatprep.subr.bf16.mxu0 %v1023
    %1519 = vmatpush1.bf16.msra.mxu0 %v1022
    %1520 = vmatprep.subr.bf16.mxu0 %v1019
    %1521 = vmatpush1.bf16.msra.mxu0 %v1018
    %1522 = vmatprep.subr.bf16.mxu0 %v1015
    %1523 = vmatpush1.bf16.msra.mxu0 %v1014
    %1524 = vmatprep.subr.bf16.mxu0 %v1011
    %1525 = vmatpush1.bf16.msra.mxu0 %v1010
    %1526 = vmatprep.subr.bf16.mxu0 %v1007
    %1527 = vmatpush1.bf16.msra.mxu0 %v1006
    %1528 = vmatprep.subr.bf16.mxu0 %v1003
    %1529 = vmatpush1.bf16.msra.mxu0 %v1002
    %1530 = vmatprep.subr.bf16.mxu0 %v1063
    %1531 = vmatpush2.bf16.msra.mxu0 %v1062
    %1532 = vmatprep.subr.bf16.mxu0 %v1059
    %1533 = vmatpush2.bf16.msra.mxu0 %v1058
    %1534 = vmatprep.subr.bf16.mxu0 %v1055
    %1535 = vmatpush2.bf16.msra.mxu0 %v1054
    %1536 = vmatprep.subr.bf16.mxu0 %v1051
    %1537 = vmatpush2.bf16.msra.mxu0 %v1050
    %1538 = vmatprep.subr.bf16.mxu0 %v1047
    %1539 = vmatpush2.bf16.msra.mxu0 %v1046
    %1540 = vmatprep.subr.bf16.mxu0 %v1043
    %1541 = vmatpush2.bf16.msra.mxu0 %v1042
    %1542 = vmatprep.subr.bf16.mxu0 %v1039
    %1543 = vmatpush2.bf16.msra.mxu0 %v1038
    %1544 = vmatprep.subr.bf16.mxu0 %v1035
    %1545 = vmatpush2.bf16.msra.mxu0 %v1034
    %1546 = vmatprep.mubr.bf16.mxu0 %v85
    %1547 = vmatmul.mubr.bf16.gmra.mxu0 %v84
    %v1548 = vpop.f32.mrf.mxu0
    %v1549 = vadd.f32 %v1508, %v1548
    %v1550 = vpop.f32.mrf.mxu0
    %v1551 = vadd.f32 %v1510, %v1550
    %v1552 = vpop.f32.mrf.mxu0
    %v1553 = vpop.f32.mrf.mxu0
    %1554 = vdwg.mxu0
    %1555 = vmatprep.subr.bf16.mxu0 0
    %1556 = vmatpush1.bf16.msra.mxu0 0
    %1557 = vmatprep.subr.bf16.mxu0 0
    %1558 = vmatpush1.bf16.msra.mxu0 0
    %1559 = vmatprep.subr.bf16.mxu0 0
    %1560 = vmatpush1.bf16.msra.mxu0 0
    %1561 = vmatprep.subr.bf16.mxu0 0
    %1562 = vmatpush1.bf16.msra.mxu0 0
    %1563 = vmatprep.subr.bf16.mxu0 0
    %1564 = vmatpush1.bf16.msra.mxu0 0
    %1565 = vmatprep.subr.bf16.mxu0 0
    %1566 = vmatpush1.bf16.msra.mxu0 0
    %1567 = vmatprep.subr.bf16.mxu0 0
    %1568 = vmatpush1.bf16.msra.mxu0 0
    %1569 = vmatprep.subr.bf16.mxu0 %v1067
    %1570 = vmatpush1.bf16.msra.mxu0 %v1066
    %1571 = vmatprep.subr.bf16.mxu0 0
    %1572 = vmatpush2.bf16.msra.mxu0 0
    %1573 = vmatprep.subr.bf16.mxu0 0
    %1574 = vmatpush2.bf16.msra.mxu0 0
    %1575 = vmatprep.subr.bf16.mxu0 0
    %1576 = vmatpush2.bf16.msra.mxu0 0
    %1577 = vmatprep.subr.bf16.mxu0 0
    %1578 = vmatpush2.bf16.msra.mxu0 0
    %1579 = vmatprep.subr.bf16.mxu0 0
    %1580 = vmatpush2.bf16.msra.mxu0 0
    %1581 = vmatprep.subr.bf16.mxu0 0
    %1582 = vmatpush2.bf16.msra.mxu0 0
    %1583 = vmatprep.subr.bf16.mxu0 0
    %1584 = vmatpush2.bf16.msra.mxu0 0
    %1585 = vmatprep.subr.bf16.mxu0 0
    %1586 = vmatpush2.bf16.msra.mxu0 0
    %1587 = vmatprep.mubr.bf16.mxu0 0
    %1588 = vmatmul.mubr.bf16.gmra.mxu0 %v1266
    %v1589 = vpop.f32.mrf.mxu0
    %v1590 = vadd.f32 %v1549, %v1589
    %v1591 = vpop.f32.mrf.mxu0
    %v1592 = vadd.f32 %v1551, %v1591
    %v1593 = vpop.f32.mrf.mxu0
    %v1594 = vpop.f32.mrf.mxu0
    %1595 = vdwg.mxu0
    %v1597 = vlaneseq
    %v1598 = vshrl.u32 %v1597, 7
    %v1599 = vsub.s32 0, %v1598
    %v1600 = vrot.slane %v87, %v1599
    %v1601 = vlaneseq
    %v1602 = vshrl.u32 %v1601, 7
    %v1603 = vsub.s32 1, %v1602
    %v1604 = vrot.slane %v87, %v1603
    %v1605 = vlaneseq
    %v1606 = vshrl.u32 %v1605, 7
    %v1607 = vsub.s32 2, %v1606
    %v1608 = vrot.slane %v87, %v1607
    %v1609 = vlaneseq
    %v1610 = vshrl.u32 %v1609, 7
    %v1611 = vsub.s32 3, %v1610
    %v1612 = vrot.slane %v87, %v1611
    %v1617 = vadd.f32 %v1600, %v1426
    %v1618 = vadd.f32 %v1604, %v1428
    %v1619 = vadd.f32 %v1608, %v1590
    %v1620 = vadd.f32 %v1612, %v1592
    %v1621 = vmax.f32 %v1617, 0.0
    %v1622 = vmax.f32 %v1618, 0.0
    %v1623 = vmax.f32 %v1619, 0.0
    %v1624 = vmax.f32 %v1620, 0.0
    %v1625 = vld [vmem:[%s4] sm:$0x1]
    %v1626 = vpack.c.bf16 %v1621, %v1621
    %v1627 = vpack.c.bf16 %v1622, %v1622
    %v1628 = vpack.c.bf16 %v1623, %v1623
    %v1629 = vpack.c.bf16 %v1624, %v1624
    %v1630 = vld [vmem:[#allocation8] sm:$0xf]
    %v1631 = vld [vmem:[#allocation8 + $0x4] sm:$0xf]
    %v1632 = vld [vmem:[#allocation8 + $0x8] sm:$0xf]
    %v1633 = vld [vmem:[#allocation8 + $0xc] sm:$0xf]
    %v1634 = vld [vmem:[#allocation8 + $0x10] sm:$0xf]
    %v1635 = vld [vmem:[#allocation8 + $0x14] sm:$0xf]
    %v1636 = vld [vmem:[#allocation8 + $0x18] sm:$0xf]
    %v1637 = vld [vmem:[#allocation8 + $0x1c] sm:$0xf]
    %v1638 = vld [vmem:[#allocation8 + $0x20] sm:$0xf]
    %v1639 = vld [vmem:[#allocation8 + $0x24] sm:$0xf]
    %v1640 = vld [vmem:[#allocation8 + $0x28] sm:$0xf]
    %v1641 = vld [vmem:[#allocation8 + $0x2c] sm:$0xf]
    %v1642 = vld [vmem:[#allocation8 + $0x30] sm:$0xf]
    %v1643 = vld [vmem:[#allocation8 + $0x34] sm:$0xf]
    %v1644 = vld [vmem:[#allocation8 + $0x38] sm:$0xf]
    %v1645 = vld [vmem:[#allocation8 + $0x3c] sm:$0xf]
    %v1646 = vld [vmem:[#allocation8 + $0x40] sm:$0xf]
    %v1647 = vld [vmem:[#allocation8 + $0x44] sm:$0xf]
    %v1648 = vld [vmem:[#allocation8 + $0x48] sm:$0xf]
    %v1649 = vld [vmem:[#allocation8 + $0x4c] sm:$0xf]
    %v1650 = vld [vmem:[#allocation8 + $0x50] sm:$0xf]
    %v1651 = vld [vmem:[#allocation8 + $0x54] sm:$0xf]
    %v1652 = vld [vmem:[#allocation8 + $0x58] sm:$0xf]
    %v1653 = vld [vmem:[#allocation8 + $0x5c] sm:$0xf]
    %v1654 = vld [vmem:[#allocation8 + $0x60] sm:$0xf]
    %v1655 = vld [vmem:[#allocation8 + $0x64] sm:$0xf]
    %v1656 = vld [vmem:[#allocation8 + $0x68] sm:$0xf]
    %v1657 = vld [vmem:[#allocation8 + $0x6c] sm:$0xf]
    %v1658 = vld [vmem:[#allocation8 + $0x70] sm:$0xf]
    %v1659 = vld [vmem:[#allocation8 + $0x74] sm:$0xf]
    %v1660 = vld [vmem:[#allocation8 + $0x78] sm:$0xf]
    %v1661 = vld [vmem:[#allocation8 + $0x7c] sm:$0xf]
    %v1662 = vld [vmem:[#allocation8 + $0x80] sm:$0xf]
    %v1663 = vld [vmem:[#allocation8 + $0x84] sm:$0xf]
    %v1664 = vld [vmem:[#allocation8 + $0x88] sm:$0xf]
    %v1665 = vld [vmem:[#allocation8 + $0x8c] sm:$0xf]
    %v1666 = vld [vmem:[#allocation8 + $0x90] sm:$0xf]
    %v1667 = vld [vmem:[#allocation8 + $0x94] sm:$0xf]
    %v1668 = vld [vmem:[#allocation8 + $0x98] sm:$0xf]
    %v1669 = vld [vmem:[#allocation8 + $0x9c] sm:$0xf]
    %v1670 = vld [vmem:[#allocation8 + $0xa0] sm:$0xf]
    %v1671 = vld [vmem:[#allocation8 + $0xa4] sm:$0xf]
    %v1672 = vld [vmem:[#allocation8 + $0xa8] sm:$0xf]
    %v1673 = vld [vmem:[#allocation8 + $0xac] sm:$0xf]
    %v1674 = vld [vmem:[#allocation8 + $0xb0] sm:$0xf]
    %v1675 = vld [vmem:[#allocation8 + $0xb4] sm:$0xf]
    %v1676 = vld [vmem:[#allocation8 + $0xb8] sm:$0xf]
    %v1677 = vld [vmem:[#allocation8 + $0xbc] sm:$0xf]
    %v1678 = vld [vmem:[#allocation8 + $0xc0] sm:$0xf]
    %v1679 = vld [vmem:[#allocation8 + $0xc4] sm:$0xf]
    %v1680 = vld [vmem:[#allocation8 + $0xc8] sm:$0xf]
    %v1681 = vld [vmem:[#allocation8 + $0xcc] sm:$0xf]
    %v1682 = vld [vmem:[#allocation8 + $0xd0] sm:$0xf]
    %v1683 = vld [vmem:[#allocation8 + $0xd4] sm:$0xf]
    %v1684 = vld [vmem:[#allocation8 + $0xd8] sm:$0xf]
    %v1685 = vld [vmem:[#allocation8 + $0xdc] sm:$0xf]
    %v1686 = vld [vmem:[#allocation8 + $0xe0] sm:$0xf]
    %v1687 = vld [vmem:[#allocation8 + $0xe4] sm:$0xf]
    %v1688 = vld [vmem:[#allocation8 + $0xe8] sm:$0xf]
    %v1689 = vld [vmem:[#allocation8 + $0xec] sm:$0xf]
    %v1690 = vld [vmem:[#allocation8 + $0xf0] sm:$0xf]
    %v1691 = vld [vmem:[#allocation8 + $0xf4] sm:$0xf]
    %v1692 = vld [vmem:[#allocation8 + $0xf8] sm:$0xf]
    %v1693 = vld [vmem:[#allocation8 + $0xfc] sm:$0xf]
    %v1758 = vunpack.c.l.b16 %v1630
    %v1759 = vunpack.c.l.b16 %v1631
    %v1760 = vunpack.c.l.b16 %v1632
    %v1761 = vunpack.c.l.b16 %v1633
    %v1762 = vunpack.c.l.b16 %v1634
    %v1763 = vunpack.c.l.b16 %v1635
    %v1764 = vunpack.c.l.b16 %v1636
    %v1765 = vunpack.c.l.b16 %v1637
    %v1766 = vunpack.c.l.b16 %v1638
    %v1767 = vunpack.c.l.b16 %v1639
    %v1768 = vunpack.c.l.b16 %v1640
    %v1769 = vunpack.c.l.b16 %v1641
    %v1770 = vunpack.c.l.b16 %v1642
    %v1771 = vunpack.c.l.b16 %v1643
    %v1772 = vunpack.c.l.b16 %v1644
    %v1773 = vunpack.c.l.b16 %v1645
    %v1774 = vunpack.c.l.b16 %v1646
    %v1775 = vunpack.c.l.b16 %v1647
    %v1776 = vunpack.c.l.b16 %v1648
    %v1777 = vunpack.c.l.b16 %v1649
    %v1778 = vunpack.c.l.b16 %v1650
    %v1779 = vunpack.c.l.b16 %v1651
    %v1780 = vunpack.c.l.b16 %v1652
    %v1781 = vunpack.c.l.b16 %v1653
    %v1782 = vunpack.c.l.b16 %v1654
    %v1783 = vunpack.c.l.b16 %v1655
    %v1784 = vunpack.c.l.b16 %v1656
    %v1785 = vunpack.c.l.b16 %v1657
    %v1786 = vunpack.c.l.b16 %v1658
    %v1787 = vunpack.c.l.b16 %v1659
    %v1788 = vunpack.c.l.b16 %v1660
    %v1789 = vunpack.c.l.b16 %v1661
    %v1790 = vunpack.c.l.b16 %v1662
    %v1791 = vunpack.c.l.b16 %v1663
    %v1792 = vunpack.c.l.b16 %v1664
    %v1793 = vunpack.c.l.b16 %v1665
    %v1794 = vunpack.c.l.b16 %v1666
    %v1795 = vunpack.c.l.b16 %v1667
    %v1796 = vunpack.c.l.b16 %v1668
    %v1797 = vunpack.c.l.b16 %v1669
    %v1798 = vunpack.c.l.b16 %v1670
    %v1799 = vunpack.c.l.b16 %v1671
    %v1800 = vunpack.c.l.b16 %v1672
    %v1801 = vunpack.c.l.b16 %v1673
    %v1802 = vunpack.c.l.b16 %v1674
    %v1803 = vunpack.c.l.b16 %v1675
    %v1804 = vunpack.c.l.b16 %v1676
    %v1805 = vunpack.c.l.b16 %v1677
    %v1806 = vunpack.c.l.b16 %v1678
    %v1807 = vunpack.c.l.b16 %v1679
    %v1808 = vunpack.c.l.b16 %v1680
    %v1809 = vunpack.c.l.b16 %v1681
    %v1810 = vunpack.c.l.b16 %v1682
    %v1811 = vunpack.c.l.b16 %v1683
    %v1812 = vunpack.c.l.b16 %v1684
    %v1813 = vunpack.c.l.b16 %v1685
    %v1814 = vunpack.c.l.b16 %v1686
    %v1815 = vunpack.c.l.b16 %v1687
    %v1816 = vunpack.c.l.b16 %v1688
    %v1817 = vunpack.c.l.b16 %v1689
    %v1818 = vunpack.c.l.b16 %v1690
    %v1819 = vunpack.c.l.b16 %v1691
    %v1820 = vunpack.c.l.b16 %v1692
    %v1821 = vunpack.c.l.b16 %v1693
    %v1822 = vpack.c.b16 %v1759, %v1758
    %v1823 = vpack.c.b16 %v1761, %v1760
    %v1824 = vpack.c.b16 %v1763, %v1762
    %v1825 = vpack.c.b16 %v1765, %v1764
    %v1826 = vpack.c.b16 %v1767, %v1766
    %v1827 = vpack.c.b16 %v1769, %v1768
    %v1828 = vpack.c.b16 %v1771, %v1770
    %v1829 = vpack.c.b16 %v1773, %v1772
    %v1830 = vpack.c.b16 %v1775, %v1774
    %v1831 = vpack.c.b16 %v1777, %v1776
    %v1832 = vpack.c.b16 %v1779, %v1778
    %v1833 = vpack.c.b16 %v1781, %v1780
    %v1834 = vpack.c.b16 %v1783, %v1782
    %v1835 = vpack.c.b16 %v1785, %v1784
    %v1836 = vpack.c.b16 %v1787, %v1786
    %v1837 = vpack.c.b16 %v1789, %v1788
    %v1838 = vpack.c.b16 %v1791, %v1790
    %v1839 = vpack.c.b16 %v1793, %v1792
    %v1840 = vpack.c.b16 %v1795, %v1794
    %v1841 = vpack.c.b16 %v1797, %v1796
    %v1842 = vpack.c.b16 %v1799, %v1798
    %v1843 = vpack.c.b16 %v1801, %v1800
    %v1844 = vpack.c.b16 %v1803, %v1802
    %v1845 = vpack.c.b16 %v1805, %v1804
    %v1846 = vpack.c.b16 %v1807, %v1806
    %v1847 = vpack.c.b16 %v1809, %v1808
    %v1848 = vpack.c.b16 %v1811, %v1810
    %v1849 = vpack.c.b16 %v1813, %v1812
    %v1850 = vpack.c.b16 %v1815, %v1814
    %v1851 = vpack.c.b16 %v1817, %v1816
    %v1852 = vpack.c.b16 %v1819, %v1818
    %v1853 = vpack.c.b16 %v1821, %v1820
    %1886 = vmatprep.subr.bf16.mxu0 0
    %1887 = vmatpush1.bf16.msra.mxu0 %v1829
    %1888 = vmatprep.subr.bf16.mxu0 0
    %1889 = vmatpush1.bf16.msra.mxu0 %v1828
    %1890 = vmatprep.subr.bf16.mxu0 0
    %1891 = vmatpush1.bf16.msra.mxu0 %v1827
    %1892 = vmatprep.subr.bf16.mxu0 0
    %1893 = vmatpush1.bf16.msra.mxu0 %v1826
    %1894 = vmatprep.subr.bf16.mxu0 0
    %1895 = vmatpush1.bf16.msra.mxu0 %v1825
    %1896 = vmatprep.subr.bf16.mxu0 0
    %1897 = vmatpush1.bf16.msra.mxu0 %v1824
    %1898 = vmatprep.subr.bf16.mxu0 0
    %1899 = vmatpush1.bf16.msra.mxu0 %v1823
    %1900 = vmatprep.subr.bf16.mxu0 0
    %1901 = vmatpush1.bf16.msra.mxu0 %v1822
    %1902 = vmatprep.subr.bf16.mxu0 0
    %1903 = vmatpush2.bf16.msra.mxu0 %v1837
    %1904 = vmatprep.subr.bf16.mxu0 0
    %1905 = vmatpush2.bf16.msra.mxu0 %v1836
    %1906 = vmatprep.subr.bf16.mxu0 0
    %1907 = vmatpush2.bf16.msra.mxu0 %v1835
    %1908 = vmatprep.subr.bf16.mxu0 0
    %1909 = vmatpush2.bf16.msra.mxu0 %v1834
    %1910 = vmatprep.subr.bf16.mxu0 0
    %1911 = vmatpush2.bf16.msra.mxu0 %v1833
    %1912 = vmatprep.subr.bf16.mxu0 0
    %1913 = vmatpush2.bf16.msra.mxu0 %v1832
    %1914 = vmatprep.subr.bf16.mxu0 0
    %1915 = vmatpush2.bf16.msra.mxu0 %v1831
    %1916 = vmatprep.subr.bf16.mxu0 0
    %1917 = vmatpush2.bf16.msra.mxu0 %v1830
    %1918 = vmatprep.mubr.bf16.mxu0 %v1627
    %1919 = vmatmul.mubr.bf16.gmra.mxu0 %v1626
    %v1920 = vpop.f32.mrf.mxu0
    %v1921 = vadd.f32 0.0, %v1920
    %v1922 = vpop.f32.mrf.mxu0
    %v1923 = vpop.f32.mrf.mxu0
    %v1924 = vpop.f32.mrf.mxu0
    %1925 = vdwg.mxu0
    %1926 = vmatprep.subr.bf16.mxu0 0
    %1927 = vmatpush1.bf16.msra.mxu0 %v1845
    %1928 = vmatprep.subr.bf16.mxu0 0
    %1929 = vmatpush1.bf16.msra.mxu0 %v1844
    %1930 = vmatprep.subr.bf16.mxu0 0
    %1931 = vmatpush1.bf16.msra.mxu0 %v1843
    %1932 = vmatprep.subr.bf16.mxu0 0
    %1933 = vmatpush1.bf16.msra.mxu0 %v1842
    %1934 = vmatprep.subr.bf16.mxu0 0
    %1935 = vmatpush1.bf16.msra.mxu0 %v1841
    %1936 = vmatprep.subr.bf16.mxu0 0
    %1937 = vmatpush1.bf16.msra.mxu0 %v1840
    %1938 = vmatprep.subr.bf16.mxu0 0
    %1939 = vmatpush1.bf16.msra.mxu0 %v1839
    %1940 = vmatprep.subr.bf16.mxu0 0
    %1941 = vmatpush1.bf16.msra.mxu0 %v1838
    %1942 = vmatprep.subr.bf16.mxu0 0
    %1943 = vmatpush2.bf16.msra.mxu0 %v1853
    %1944 = vmatprep.subr.bf16.mxu0 0
    %1945 = vmatpush2.bf16.msra.mxu0 %v1852
    %1946 = vmatprep.subr.bf16.mxu0 0
    %1947 = vmatpush2.bf16.msra.mxu0 %v1851
    %1948 = vmatprep.subr.bf16.mxu0 0
    %1949 = vmatpush2.bf16.msra.mxu0 %v1850
    %1950 = vmatprep.subr.bf16.mxu0 0
    %1951 = vmatpush2.bf16.msra.mxu0 %v1849
    %1952 = vmatprep.subr.bf16.mxu0 0
    %1953 = vmatpush2.bf16.msra.mxu0 %v1848
    %1954 = vmatprep.subr.bf16.mxu0 0
    %1955 = vmatpush2.bf16.msra.mxu0 %v1847
    %1956 = vmatprep.subr.bf16.mxu0 0
    %1957 = vmatpush2.bf16.msra.mxu0 %v1846
    %1958 = vmatprep.mubr.bf16.mxu0 %v1629
    %1959 = vmatmul.mubr.bf16.gmra.mxu0 %v1628
    %v1960 = vpop.f32.mrf.mxu0
    %v1961 = vadd.f32 %v1921, %v1960
    %v1962 = vpop.f32.mrf.mxu0
    %v1963 = vpop.f32.mrf.mxu0
    %v1964 = vpop.f32.mrf.mxu0
    %1965 = vdwg.mxu0
    %v1967 = vlaneseq
    %v1968 = vshrl.u32 %v1967, 7
    %v1969 = vsub.s32 0, %v1968
    %v1970 = vrot.slane %v1625, %v1969
    %v1972 = vadd.f32 %v1970, %v1961
    %1973 = vst [vmem:[#allocation10] sm:$0xff] %v1972
    // Predicated region
    $region38: #{tpu_custom_call.1} parent=1 // pred_check
      _
    $region39: #{tpu_custom_call.1} parent=1 // pred_check_branch
      %1975 = sbr.rel (0) target = $region41
    $region40: #{tpu_custom_call.1} parent=1 // pred_region
      %s1977 = ssub.s32 128, 128
      %1978 = vsyncadd [#allocation4], %s1977
      %s1980 = sshll.u32 [#allocation10], 4
      %s1981 = int_to_ptr.vmem [resolvable:$true] %s1980
      %1983 = dma.vmem_to_hbm [thread:$0]  %s1981, 128, %s5, [#allocation4]
    $region41: #{tpu_custom_call.1} parent=1 // pred_fallthru
      _
    // Predicated region
    $region42: #{tpu_custom_call.1} parent=1 // pred_check
      _
    $region43: #{tpu_custom_call.1} parent=1 // pred_check_branch
      %1985 = sbr.rel (0) target = $region45
    $region44: #{tpu_custom_call.1} parent=1 // pred_region
      %1986 = dma.done [#allocation4], 128
    $region45: #{tpu_custom_call.1} parent=1 // pred_fallthru
      _
    %1987 = vsyncpa [#allocation3], 1
    %1988 = vsyncpa [#allocation6], 1
    %1989 = vsyncpa [#allocation9], 1
    %1990 = vsyncpa [#allocation4], 1

</llo_original>
